<compile_context>
chip_gen: v7x
topology: tpu7x:2x2x1
jax: 0.10.0
libtpu: 0.0.40
codegen_flags: <defaults>
</compile_context>

<pallas_src>
import functools
import math

import jax
import jax.numpy as jnp
from jax.experimental import pallas as pl
from jax.experimental.pallas import tpu as pltpu

FREQ_DIM = 256          # frequency_embedding_size (fixed in the PyTorch module)
HALF = FREQ_DIM // 2    # 128
LANE = 128
SUBLANE = 8
MXU_MIN_K = 128         # below this contraction depth, fc(x) runs on the VPU


def _round_up(v, m):
    return ((v + m - 1) // m) * m


def _pick_tile_n(n):
    """Row tile: large (low per-step overhead) but always >= 2 grid steps when
    the batch allows, so v7x's second TensorCore gets work."""
    n8 = _round_up(max(n, 1), SUBLANE)
    tile = min(1024, n8)
    if n8 >= 2 * SUBLANE:
        tile = min(tile, _round_up((n8 + 1) // 2, SUBLANE))
    return tile


# ---------------------------------------------------------------------------
# fused kernel: all TimeLinear (+ ReLU) layers in one body
# ---------------------------------------------------------------------------
def _fused_simplenet_kernel(*refs, fc_on_mxu, n_layers):
    emb_ref = refs[0]                        # (tile_n, 256) bf16  [cos | sin]
    x_ref = refs[1]                          # (tile_n, dim_in) f32
    w_refs = refs[2:2 + 6 * n_layers]        # per layer: wfc, bfc, w1, b1, w2, b2
    out_ref = refs[2 + 6 * n_layers]

    emb = emb_ref[...]
    h = x_ref[...]

    for li in range(n_layers):
        wfc_ref, bfc_ref, w1_ref, b1_ref, w2_ref, b2_ref = w_refs[6 * li:6 * li + 6]

        # TimeEmbedding MLP: Linear(256, d) -> SiLU -> Linear(d, d)
        e = (jnp.dot(emb, w1_ref[...], preferred_element_type=jnp.float32)
             + b1_ref[...])
        e = e * pl.reciprocal(1.0 + jnp.exp(-e), approx=True)      # SiLU (EUP)
        alpha = (jnp.dot(e.astype(jnp.bfloat16), w2_ref[...],
                         preferred_element_type=jnp.float32) + b2_ref[...])

        # fc(x)
        if fc_on_mxu[li]:
            xo = (jnp.dot(h.astype(jnp.bfloat16), wfc_ref[...],
                          preferred_element_type=jnp.float32) + bfc_ref[...])
        else:
            # tiny contraction (K << 128): unrolled VPU FMAs, keep the MXU free
            wfc = wfc_ref[...]                                      # (dim_in, d_out_p)
            xo = h[:, 0:1] * wfc[0:1, :] + bfc_ref[...]
            for k in range(1, h.shape[1]):
                xo = xo + h[:, k:k + 1] * wfc[k:k + 1, :]

        h = alpha * xo
        if li < n_layers - 1:                                       # fused ReLU
            h = jnp.maximum(h, 0.0)

    out_ref[...] = h.astype(out_ref.dtype)


# ---------------------------------------------------------------------------
# parameter init (PyTorch-style) and packing (pad / bf16-cast)
# ---------------------------------------------------------------------------
def init_simplenet_params(key, dim_in, dim_out, dim_hids):
    """PyTorch-default uniform(+-1/sqrt(fan_in)); weights stored (fan_in, fan_out)."""
    dims = [dim_in] + list(dim_hids) + [dim_out]
    layers = []
    for li in range(len(dims) - 1):
        d_in, d_out = dims[li], dims[li + 1]
        key, *ks = jax.random.split(key, 7)

        def lin(kw, kb, fan_in, fan_out):
            bound = 1.0 / math.sqrt(fan_in)
            w = jax.random.uniform(kw, (fan_in, fan_out), jnp.float32, -bound, bound)
            b = jax.random.uniform(kb, (fan_out,), jnp.float32, -bound, bound)
            return w, b

        w_fc, b_fc = lin(ks[0], ks[1], d_in, d_out)
        w1, b1 = lin(ks[2], ks[3], FREQ_DIM, d_out)
        w2, b2 = lin(ks[4], ks[5], d_out, d_out)
        layers.append(dict(w_fc=w_fc, b_fc=b_fc, w1=w1, b1=b1, w2=w2, b2=b2,
                           dim_in=d_in, dim_out=d_out))
    return layers


def pack_simplenet_params(layers):
    """Pad lane dims to multiples of 128 (zero columns propagate zeros through
    the whole net), cast MXU operands to bf16. w1 stays packed (256, d) for a
    single K=256 contraction."""
    packed = []
    prev_cols = layers[0]["dim_in"]            # actual column count of incoming x
    for lyr in layers:
        d_out = lyr["dim_out"]
        d_out_p = _round_up(d_out, LANE)
        d_in_p = prev_cols

        def pad2(a, r, c):
            return jnp.pad(a, ((0, r - a.shape[0]), (0, c - a.shape[1])))

        fc_on_mxu = d_in_p >= MXU_MIN_K
        w_fc = pad2(lyr["w_fc"], d_in_p, d_out_p)
        if fc_on_mxu:
            w_fc = w_fc.astype(jnp.bfloat16)
        b_fc = pad2(lyr["b_fc"][None, :], 1, d_out_p)
        w1 = pad2(lyr["w1"], FREQ_DIM, d_out_p).astype(jnp.bfloat16)
        b1 = pad2(lyr["b1"][None, :], 1, d_out_p)
        w2 = pad2(lyr["w2"], d_out_p, d_out_p).astype(jnp.bfloat16)
        b2 = pad2(lyr["b2"][None, :], 1, d_out_p)
        packed.append(dict(w_fc=w_fc, b_fc=b_fc, w1=w1, b1=b1, w2=w2, b2=b2,
                           dim_out=d_out, dim_out_p=d_out_p, fc_on_mxu=fc_on_mxu))
        prev_cols = d_out_p
    return packed


# ---------------------------------------------------------------------------
# full SimpleNet forward (single fused Pallas call) and pure-JAX reference
# ---------------------------------------------------------------------------
def simplenet_forward(x, t, packed):
    n = x.shape[0]
    n_layers = len(packed)
    tile_n = _pick_tile_n(n)
    n_pad = _round_up(n, tile_n)
    dim_in = x.shape[1]
    d_out_p_last = packed[-1]["dim_out_p"]

    xp = jnp.pad(x.astype(jnp.float32), ((0, n_pad - n), (0, 0)))

    # sinusoidal timestep embedding, computed once (f32 cos/sin, then bf16),
    # streamed lane-dense: [cos(args) | sin(args)] of shape (n_pad, 256)
    freqs = jnp.exp(-math.log(10000.0)
                    * jnp.arange(HALF, dtype=jnp.float32) / HALF)
    args = t.astype(jnp.float32).reshape(n, 1) * freqs[None, :]
    emb = jnp.concatenate([jnp.cos(args), jnp.sin(args)], axis=-1)
    emb = jnp.pad(emb, ((0, n_pad - n), (0, 0))).astype(jnp.bfloat16)

    row = lambda i: (i, 0)      # streamed tiles
    const = lambda i: (0, 0)    # VMEM-resident weights / biases

    in_specs = [pl.BlockSpec((tile_n, FREQ_DIM), row),
                pl.BlockSpec((tile_n, dim_in), row)]
    operands = [emb, xp]
    fc_on_mxu = []
    for lyr in packed:
        for name in ("w_fc", "b_fc", "w1", "b1", "w2", "b2"):
            in_specs.append(pl.BlockSpec(lyr[name].shape, const))
            operands.append(lyr[name])
        fc_on_mxu.append(lyr["fc_on_mxu"])

    # VMEM budget from actual byte counts (+~2x headroom), not chip fraction.
    resident = sum(int(a.size) * a.dtype.itemsize
                   for a in operands[2:])
    streamed = tile_n * (FREQ_DIM * 2 + dim_in * 4 + d_out_p_last * 4)
    max_dop = max(p["dim_out_p"] for p in packed)
    scratch = tile_n * max_dop * 4 * 6 * n_layers        # f32 temporaries, generous
    vmem_limit = 2 * (resident + 2 * streamed + scratch) + (4 << 20)
    vmem_limit = int(min(max(vmem_limit, 8 << 20), 96 << 20))

    kernel = functools.partial(_fused_simplenet_kernel,
                               fc_on_mxu=tuple(fc_on_mxu), n_layers=n_layers)

    out = pl.pallas_call(
        kernel,
        out_shape=jax.ShapeDtypeStruct((n_pad, d_out_p_last), jnp.float32),
        grid=(n_pad // tile_n,),
        in_specs=in_specs,
        out_specs=pl.BlockSpec((tile_n, d_out_p_last), row),
        compiler_params=pltpu.CompilerParams(
            dimension_semantics=("parallel",),
            vmem_limit_bytes=vmem_limit),
    )(*operands)

    return out[:n, :packed[-1]["dim_out"]]


def simplenet_ref(x, t, layers):
    """Pure-JAX f32 reference mirroring the PyTorch forward."""
    freqs = jnp.exp(-math.log(10000.0) * jnp.arange(HALF, dtype=jnp.float32) / HALF)
    args = t.astype(jnp.float32)[:, None] * freqs[None]
    emb = jnp.concatenate([jnp.cos(args), jnp.sin(args)], axis=-1)
    h = x.astype(jnp.float32)
    for li, lyr in enumerate(layers):
        e = emb @ lyr["w1"] + lyr["b1"]
        e = e * jax.nn.sigmoid(e)
        alpha = e @ lyr["w2"] + lyr["b2"]
        xo = h @ lyr["w_fc"] + lyr["b_fc"]
        h = alpha * xo
        if li < len(layers) - 1:
            h = jnp.maximum(h, 0.0)
    return h


if __name__ == "__main__":
    key = jax.random.PRNGKey(0)
    k_x, k_t, k_p = jax.random.split(key, 3)

    # 2-D plot diffusion shapes: points in R^2, small hidden widths.
    N, DIM_IN, DIM_OUT = 8, 2, 2
    DIM_HIDS = [128, 128]

    x = jax.random.normal(k_x, (N, DIM_IN), jnp.float32)
    t = jax.random.randint(k_t, (N,), 0, 1000).astype(jnp.float32)

    raw_layers = init_simplenet_params(k_p, DIM_IN, DIM_OUT, DIM_HIDS)
    packed_layers = pack_simplenet_params(raw_layers)

    out = simplenet_forward(x, t, packed_layers)
    jax.block_until_ready(out)

    ref = simplenet_ref(x, t, raw_layers)
    assert out.shape == (N, DIM_OUT)
    rel_err = float(jnp.max(jnp.abs(out - ref)) / (jnp.max(jnp.abs(ref)) + 1e-6))
    assert rel_err < 5e-2, f"mismatch vs reference: rel_err={rel_err:.4f}"

    print("KERNEL_OK")
</pallas_src>

<mosaic_0001>
module attributes {stable_mosaic.version = 11 : i64} {
  func.func @_fused_simplenet_kernel(%arg0: i32, %arg1: memref<8x256xbf16, #tpu.memory_space<vmem>>, %arg2: memref<8x2xf32, #tpu.memory_space<vmem>>, %arg3: memref<2x128xf32, #tpu.memory_space<vmem>>, %arg4: memref<1x128xf32, #tpu.memory_space<vmem>>, %arg5: memref<256x128xbf16, #tpu.memory_space<vmem>>, %arg6: memref<1x128xf32, #tpu.memory_space<vmem>>, %arg7: memref<128x128xbf16, #tpu.memory_space<vmem>>, %arg8: memref<1x128xf32, #tpu.memory_space<vmem>>, %arg9: memref<128x128xbf16, #tpu.memory_space<vmem>>, %arg10: memref<1x128xf32, #tpu.memory_space<vmem>>, %arg11: memref<256x128xbf16, #tpu.memory_space<vmem>>, %arg12: memref<1x128xf32, #tpu.memory_space<vmem>>, %arg13: memref<128x128xbf16, #tpu.memory_space<vmem>>, %arg14: memref<1x128xf32, #tpu.memory_space<vmem>>, %arg15: memref<128x128xbf16, #tpu.memory_space<vmem>>, %arg16: memref<1x128xf32, #tpu.memory_space<vmem>>, %arg17: memref<256x128xbf16, #tpu.memory_space<vmem>>, %arg18: memref<1x128xf32, #tpu.memory_space<vmem>>, %arg19: memref<128x128xbf16, #tpu.memory_space<vmem>>, %arg20: memref<1x128xf32, #tpu.memory_space<vmem>>, %arg21: memref<8x128xf32, #tpu.memory_space<vmem>>) attributes {dimension_semantics = [#tpu.dimension_semantics<parallel>], iteration_bounds = array<i64: 1>, scalar_prefetch = 0 : i64, scratch_operands = 0 : i64, tpu.core_type = #tpu.core_type<tc>, window_params = [{transform_indices = @transform_0, window_bounds = array<i64: 8, 256>}, {transform_indices = @transform_1, window_bounds = array<i64: 8, 2>}, {pipeline_mode = #tpu.pipeline_mode<synchronous>, transform_indices = @transform_2, window_bounds = array<i64: 2, 128>}, {pipeline_mode = #tpu.pipeline_mode<synchronous>, transform_indices = @transform_3, window_bounds = array<i64: 1, 128>}, {pipeline_mode = #tpu.pipeline_mode<synchronous>, transform_indices = @transform_4, window_bounds = array<i64: 256, 128>}, {pipeline_mode = #tpu.pipeline_mode<synchronous>, transform_indices = @transform_5, window_bounds = array<i64: 1, 128>}, {pipeline_mode = #tpu.pipeline_mode<synchronous>, transform_indices = @transform_6, window_bounds = array<i64: 128, 128>}, {pipeline_mode = #tpu.pipeline_mode<synchronous>, transform_indices = @transform_7, window_bounds = array<i64: 1, 128>}, {pipeline_mode = #tpu.pipeline_mode<synchronous>, transform_indices = @transform_8, window_bounds = array<i64: 128, 128>}, {pipeline_mode = #tpu.pipeline_mode<synchronous>, transform_indices = @transform_9, window_bounds = array<i64: 1, 128>}, {pipeline_mode = #tpu.pipeline_mode<synchronous>, transform_indices = @transform_10, window_bounds = array<i64: 256, 128>}, {pipeline_mode = #tpu.pipeline_mode<synchronous>, transform_indices = @transform_11, window_bounds = array<i64: 1, 128>}, {pipeline_mode = #tpu.pipeline_mode<synchronous>, transform_indices = @transform_12, window_bounds = array<i64: 128, 128>}, {pipeline_mode = #tpu.pipeline_mode<synchronous>, transform_indices = @transform_13, window_bounds = array<i64: 1, 128>}, {pipeline_mode = #tpu.pipeline_mode<synchronous>, transform_indices = @transform_14, window_bounds = array<i64: 128, 128>}, {pipeline_mode = #tpu.pipeline_mode<synchronous>, transform_indices = @transform_15, window_bounds = array<i64: 1, 128>}, {pipeline_mode = #tpu.pipeline_mode<synchronous>, transform_indices = @transform_16, window_bounds = array<i64: 256, 128>}, {pipeline_mode = #tpu.pipeline_mode<synchronous>, transform_indices = @transform_17, window_bounds = array<i64: 1, 128>}, {pipeline_mode = #tpu.pipeline_mode<synchronous>, transform_indices = @transform_18, window_bounds = array<i64: 128, 128>}, {pipeline_mode = #tpu.pipeline_mode<synchronous>, transform_indices = @transform_19, window_bounds = array<i64: 1, 128>}, {transform_indices = @transform_20, window_bounds = array<i64: 8, 128>}]} {
    %c0 = arith.constant 0 : index
    %c0_0 = arith.constant 0 : index
    %0 = vector.load %arg1[%c0, %c0_0] : memref<8x256xbf16, #tpu.memory_space<vmem>>, vector<8x256xbf16>
    %c0_1 = arith.constant 0 : index
    %c0_2 = arith.constant 0 : index
    %1 = vector.load %arg2[%c0_1, %c0_2] : memref<8x2xf32, #tpu.memory_space<vmem>>, vector<8x2xf32>
    %c0_3 = arith.constant 0 : index
    %c0_4 = arith.constant 0 : index
    %2 = vector.load %arg5[%c0_3, %c0_4] : memref<256x128xbf16, #tpu.memory_space<vmem>>, vector<256x128xbf16>
    %cst = arith.constant dense<0.000000e+00> : vector<8x128xf32>
    %3 = tpu.matmul %0, %2, %cst {dimension_numbers = #tpu.dot_dimension_numbers<[1], [0], [0], [1], [0, 0, 1, 1], [], []>} : vector<8x256xbf16>, vector<256x128xbf16>, vector<8x128xf32> -> vector<8x128xf32>
    %c0_5 = arith.constant 0 : index
    %c0_6 = arith.constant 0 : index
    %4 = vector.load %arg6[%c0_5, %c0_6] : memref<1x128xf32, #tpu.memory_space<vmem>>, vector<1x128xf32>
    %5 = vector.broadcast %4 : vector<1x128xf32> to vector<8x128xf32>
    %6 = arith.addf %3, %5 : vector<8x128xf32>
    %cst_7 = arith.constant 0.000000e+00 : f32
    %7 = vector.broadcast %cst_7 : f32 to vector<8x128xf32>
    %8 = arith.subf %7, %6 : vector<8x128xf32>
    %9 = math.exp %8 : vector<8x128xf32>
    %cst_8 = arith.constant 1.000000e+00 : f32
    %10 = vector.broadcast %cst_8 : f32 to vector<8x128xf32>
    %11 = arith.addf %10, %9 : vector<8x128xf32>
    %12 = tpu.reciprocal %11 {approx = true} : vector<8x128xf32> -> vector<8x128xf32>
    %13 = arith.mulf %6, %12 : vector<8x128xf32>
    %14 = arith.truncf %13 : vector<8x128xf32> to vector<8x128xbf16>
    %c0_9 = arith.constant 0 : index
    %c0_10 = arith.constant 0 : index
    %15 = vector.load %arg7[%c0_9, %c0_10] : memref<128x128xbf16, #tpu.memory_space<vmem>>, vector<128x128xbf16>
    %cst_11 = arith.constant dense<0.000000e+00> : vector<8x128xf32>
    %16 = tpu.matmul %14, %15, %cst_11 {dimension_numbers = #tpu.dot_dimension_numbers<[1], [0], [0], [1], [0, 0, 1, 1], [], []>} : vector<8x128xbf16>, vector<128x128xbf16>, vector<8x128xf32> -> vector<8x128xf32>
    %c0_12 = arith.constant 0 : index
    %c0_13 = arith.constant 0 : index
    %17 = vector.load %arg8[%c0_12, %c0_13] : memref<1x128xf32, #tpu.memory_space<vmem>>, vector<1x128xf32>
    %18 = vector.broadcast %17 : vector<1x128xf32> to vector<8x128xf32>
    %19 = arith.addf %16, %18 : vector<8x128xf32>
    %c0_14 = arith.constant 0 : index
    %c0_15 = arith.constant 0 : index
    %20 = vector.load %arg3[%c0_14, %c0_15] : memref<2x128xf32, #tpu.memory_space<vmem>>, vector<2x128xf32>
    %21 = vector.extract_strided_slice %1 {offsets = [0, 0], sizes = [8, 1], strides = [1, 1]} : vector<8x2xf32> to vector<8x1xf32>
    %22 = vector.extract_strided_slice %20 {offsets = [0, 0], sizes = [1, 128], strides = [1, 1]} : vector<2x128xf32> to vector<1x128xf32>
    %23 = vector.broadcast %21 : vector<8x1xf32> to vector<8x128xf32>
    %24 = vector.broadcast %22 : vector<1x128xf32> to vector<8x128xf32>
    %25 = arith.mulf %23, %24 : vector<8x128xf32>
    %c0_16 = arith.constant 0 : index
    %c0_17 = arith.constant 0 : index
    %26 = vector.load %arg4[%c0_16, %c0_17] : memref<1x128xf32, #tpu.memory_space<vmem>>, vector<1x128xf32>
    %27 = vector.broadcast %26 : vector<1x128xf32> to vector<8x128xf32>
    %28 = arith.addf %25, %27 : vector<8x128xf32>
    %29 = vector.extract_strided_slice %1 {offsets = [0, 1], sizes = [8, 1], strides = [1, 1]} : vector<8x2xf32> to vector<8x1xf32>
    %30 = vector.extract_strided_slice %20 {offsets = [1, 0], sizes = [1, 128], strides = [1, 1]} : vector<2x128xf32> to vector<1x128xf32>
    %31 = vector.broadcast %29 : vector<8x1xf32> to vector<8x128xf32>
    %32 = vector.broadcast %30 : vector<1x128xf32> to vector<8x128xf32>
    %33 = arith.mulf %31, %32 : vector<8x128xf32>
    %34 = arith.addf %28, %33 : vector<8x128xf32>
    %35 = arith.mulf %19, %34 : vector<8x128xf32>
    %cst_18 = arith.constant 0.000000e+00 : f32
    %36 = vector.broadcast %cst_18 : f32 to vector<8x128xf32>
    %37 = arith.maximumf %35, %36 : vector<8x128xf32>
    %c0_19 = arith.constant 0 : index
    %c0_20 = arith.constant 0 : index
    %38 = vector.load %arg11[%c0_19, %c0_20] : memref<256x128xbf16, #tpu.memory_space<vmem>>, vector<256x128xbf16>
    %cst_21 = arith.constant dense<0.000000e+00> : vector<8x128xf32>
    %39 = tpu.matmul %0, %38, %cst_21 {dimension_numbers = #tpu.dot_dimension_numbers<[1], [0], [0], [1], [0, 0, 1, 1], [], []>} : vector<8x256xbf16>, vector<256x128xbf16>, vector<8x128xf32> -> vector<8x128xf32>
    %c0_22 = arith.constant 0 : index
    %c0_23 = arith.constant 0 : index
    %40 = vector.load %arg12[%c0_22, %c0_23] : memref<1x128xf32, #tpu.memory_space<vmem>>, vector<1x128xf32>
    %41 = vector.broadcast %40 : vector<1x128xf32> to vector<8x128xf32>
    %42 = arith.addf %39, %41 : vector<8x128xf32>
    %cst_24 = arith.constant 0.000000e+00 : f32
    %43 = vector.broadcast %cst_24 : f32 to vector<8x128xf32>
    %44 = arith.subf %43, %42 : vector<8x128xf32>
    %45 = math.exp %44 : vector<8x128xf32>
    %cst_25 = arith.constant 1.000000e+00 : f32
    %46 = vector.broadcast %cst_25 : f32 to vector<8x128xf32>
    %47 = arith.addf %46, %45 : vector<8x128xf32>
    %48 = tpu.reciprocal %47 {approx = true} : vector<8x128xf32> -> vector<8x128xf32>
    %49 = arith.mulf %42, %48 : vector<8x128xf32>
    %50 = arith.truncf %49 : vector<8x128xf32> to vector<8x128xbf16>
    %c0_26 = arith.constant 0 : index
    %c0_27 = arith.constant 0 : index
    %51 = vector.load %arg13[%c0_26, %c0_27] : memref<128x128xbf16, #tpu.memory_space<vmem>>, vector<128x128xbf16>
    %cst_28 = arith.constant dense<0.000000e+00> : vector<8x128xf32>
    %52 = tpu.matmul %50, %51, %cst_28 {dimension_numbers = #tpu.dot_dimension_numbers<[1], [0], [0], [1], [0, 0, 1, 1], [], []>} : vector<8x128xbf16>, vector<128x128xbf16>, vector<8x128xf32> -> vector<8x128xf32>
    %c0_29 = arith.constant 0 : index
    %c0_30 = arith.constant 0 : index
    %53 = vector.load %arg14[%c0_29, %c0_30] : memref<1x128xf32, #tpu.memory_space<vmem>>, vector<1x128xf32>
    %54 = vector.broadcast %53 : vector<1x128xf32> to vector<8x128xf32>
    %55 = arith.addf %52, %54 : vector<8x128xf32>
    %56 = arith.truncf %37 : vector<8x128xf32> to vector<8x128xbf16>
    %c0_31 = arith.constant 0 : index
    %c0_32 = arith.constant 0 : index
    %57 = vector.load %arg9[%c0_31, %c0_32] : memref<128x128xbf16, #tpu.memory_space<vmem>>, vector<128x128xbf16>
    %cst_33 = arith.constant dense<0.000000e+00> : vector<8x128xf32>
    %58 = tpu.matmul %56, %57, %cst_33 {dimension_numbers = #tpu.dot_dimension_numbers<[1], [0], [0], [1], [0, 0, 1, 1], [], []>} : vector<8x128xbf16>, vector<128x128xbf16>, vector<8x128xf32> -> vector<8x128xf32>
    %c0_34 = arith.constant 0 : index
    %c0_35 = arith.constant 0 : index
    %59 = vector.load %arg10[%c0_34, %c0_35] : memref<1x128xf32, #tpu.memory_space<vmem>>, vector<1x128xf32>
    %60 = vector.broadcast %59 : vector<1x128xf32> to vector<8x128xf32>
    %61 = arith.addf %58, %60 : vector<8x128xf32>
    %62 = arith.mulf %55, %61 : vector<8x128xf32>
    %cst_36 = arith.constant 0.000000e+00 : f32
    %63 = vector.broadcast %cst_36 : f32 to vector<8x128xf32>
    %64 = arith.maximumf %62, %63 : vector<8x128xf32>
    %c0_37 = arith.constant 0 : index
    %c0_38 = arith.constant 0 : index
    %65 = vector.load %arg17[%c0_37, %c0_38] : memref<256x128xbf16, #tpu.memory_space<vmem>>, vector<256x128xbf16>
    %cst_39 = arith.constant dense<0.000000e+00> : vector<8x128xf32>
    %66 = tpu.matmul %0, %65, %cst_39 {dimension_numbers = #tpu.dot_dimension_numbers<[1], [0], [0], [1], [0, 0, 1, 1], [], []>} : vector<8x256xbf16>, vector<256x128xbf16>, vector<8x128xf32> -> vector<8x128xf32>
    %c0_40 = arith.constant 0 : index
    %c0_41 = arith.constant 0 : index
    %67 = vector.load %arg18[%c0_40, %c0_41] : memref<1x128xf32, #tpu.memory_space<vmem>>, vector<1x128xf32>
    %68 = vector.broadcast %67 : vector<1x128xf32> to vector<8x128xf32>
    %69 = arith.addf %66, %68 : vector<8x128xf32>
    %cst_42 = arith.constant 0.000000e+00 : f32
    %70 = vector.broadcast %cst_42 : f32 to vector<8x128xf32>
    %71 = arith.subf %70, %69 : vector<8x128xf32>
    %72 = math.exp %71 : vector<8x128xf32>
    %cst_43 = arith.constant 1.000000e+00 : f32
    %73 = vector.broadcast %cst_43 : f32 to vector<8x128xf32>
    %74 = arith.addf %73, %72 : vector<8x128xf32>
    %75 = tpu.reciprocal %74 {approx = true} : vector<8x128xf32> -> vector<8x128xf32>
    %76 = arith.mulf %69, %75 : vector<8x128xf32>
    %77 = arith.truncf %76 : vector<8x128xf32> to vector<8x128xbf16>
    %c0_44 = arith.constant 0 : index
    %c0_45 = arith.constant 0 : index
    %78 = vector.load %arg19[%c0_44, %c0_45] : memref<128x128xbf16, #tpu.memory_space<vmem>>, vector<128x128xbf16>
    %cst_46 = arith.constant dense<0.000000e+00> : vector<8x128xf32>
    %79 = tpu.matmul %77, %78, %cst_46 {dimension_numbers = #tpu.dot_dimension_numbers<[1], [0], [0], [1], [0, 0, 1, 1], [], []>} : vector<8x128xbf16>, vector<128x128xbf16>, vector<8x128xf32> -> vector<8x128xf32>
    %c0_47 = arith.constant 0 : index
    %c0_48 = arith.constant 0 : index
    %80 = vector.load %arg20[%c0_47, %c0_48] : memref<1x128xf32, #tpu.memory_space<vmem>>, vector<1x128xf32>
    %81 = vector.broadcast %80 : vector<1x128xf32> to vector<8x128xf32>
    %82 = arith.addf %79, %81 : vector<8x128xf32>
    %83 = arith.truncf %64 : vector<8x128xf32> to vector<8x128xbf16>
    %c0_49 = arith.constant 0 : index
    %c0_50 = arith.constant 0 : index
    %84 = vector.load %arg15[%c0_49, %c0_50] : memref<128x128xbf16, #tpu.memory_space<vmem>>, vector<128x128xbf16>
    %cst_51 = arith.constant dense<0.000000e+00> : vector<8x128xf32>
    %85 = tpu.matmul %83, %84, %cst_51 {dimension_numbers = #tpu.dot_dimension_numbers<[1], [0], [0], [1], [0, 0, 1, 1], [], []>} : vector<8x128xbf16>, vector<128x128xbf16>, vector<8x128xf32> -> vector<8x128xf32>
    %c0_52 = arith.constant 0 : index
    %c0_53 = arith.constant 0 : index
    %86 = vector.load %arg16[%c0_52, %c0_53] : memref<1x128xf32, #tpu.memory_space<vmem>>, vector<1x128xf32>
    %87 = vector.broadcast %86 : vector<1x128xf32> to vector<8x128xf32>
    %88 = arith.addf %85, %87 : vector<8x128xf32>
    %89 = arith.mulf %82, %88 : vector<8x128xf32>
    %c0_54 = arith.constant 0 : index
    %c0_55 = arith.constant 0 : index
    %90 = vector.load %arg21[%c0_54, %c0_55] : memref<8x128xf32, #tpu.memory_space<vmem>>, vector<8x128xf32>
    tpu.vector_store %arg21[%c0_54, %c0_55], %89 {strides = array<i32>} : memref<8x128xf32, #tpu.memory_space<vmem>>, vector<8x128xf32>,
    return
  }
  func.func @transform_0(%arg0: i32) -> (i32, i32) {
    %c0_i32 = arith.constant 0 : i32
    %c0_i32_0 = arith.constant 0 : i32
    return %arg0, %c0_i32 : i32, i32
  }
  func.func @transform_1(%arg0: i32) -> (i32, i32) {
    %c0_i32 = arith.constant 0 : i32
    %c0_i32_0 = arith.constant 0 : i32
    return %arg0, %c0_i32 : i32, i32
  }
  func.func @transform_2(%arg0: i32) -> (i32, i32) {
    %c0_i32 = arith.constant 0 : i32
    %c0_i32_0 = arith.constant 0 : i32
    %c0_i32_1 = arith.constant 0 : i32
    return %c0_i32, %c0_i32_0 : i32, i32
  }
  func.func @transform_3(%arg0: i32) -> (i32, i32) {
    %c0_i32 = arith.constant 0 : i32
    %c0_i32_0 = arith.constant 0 : i32
    %c0_i32_1 = arith.constant 0 : i32
    return %c0_i32, %c0_i32_0 : i32, i32
  }
  func.func @transform_4(%arg0: i32) -> (i32, i32) {
    %c0_i32 = arith.constant 0 : i32
    %c0_i32_0 = arith.constant 0 : i32
    %c0_i32_1 = arith.constant 0 : i32
    return %c0_i32, %c0_i32_0 : i32, i32
  }
  func.func @transform_5(%arg0: i32) -> (i32, i32) {
    %c0_i32 = arith.constant 0 : i32
    %c0_i32_0 = arith.constant 0 : i32
    %c0_i32_1 = arith.constant 0 : i32
    return %c0_i32, %c0_i32_0 : i32, i32
  }
  func.func @transform_6(%arg0: i32) -> (i32, i32) {
    %c0_i32 = arith.constant 0 : i32
    %c0_i32_0 = arith.constant 0 : i32
    %c0_i32_1 = arith.constant 0 : i32
    return %c0_i32, %c0_i32_0 : i32, i32
  }
  func.func @transform_7(%arg0: i32) -> (i32, i32) {
    %c0_i32 = arith.constant 0 : i32
    %c0_i32_0 = arith.constant 0 : i32
    %c0_i32_1 = arith.constant 0 : i32
    return %c0_i32, %c0_i32_0 : i32, i32
  }
  func.func @transform_8(%arg0: i32) -> (i32, i32) {
    %c0_i32 = arith.constant 0 : i32
    %c0_i32_0 = arith.constant 0 : i32
    %c0_i32_1 = arith.constant 0 : i32
    return %c0_i32, %c0_i32_0 : i32, i32
  }
  func.func @transform_9(%arg0: i32) -> (i32, i32) {
    %c0_i32 = arith.constant 0 : i32
    %c0_i32_0 = arith.constant 0 : i32
    %c0_i32_1 = arith.constant 0 : i32
    return %c0_i32, %c0_i32_0 : i32, i32
  }
  func.func @transform_10(%arg0: i32) -> (i32, i32) {
    %c0_i32 = arith.constant 0 : i32
    %c0_i32_0 = arith.constant 0 : i32
    %c0_i32_1 = arith.constant 0 : i32
    return %c0_i32, %c0_i32_0 : i32, i32
  }
  func.func @transform_11(%arg0: i32) -> (i32, i32) {
    %c0_i32 = arith.constant 0 : i32
    %c0_i32_0 = arith.constant 0 : i32
    %c0_i32_1 = arith.constant 0 : i32
    return %c0_i32, %c0_i32_0 : i32, i32
  }
  func.func @transform_12(%arg0: i32) -> (i32, i32) {
    %c0_i32 = arith.constant 0 : i32
    %c0_i32_0 = arith.constant 0 : i32
    %c0_i32_1 = arith.constant 0 : i32
    return %c0_i32, %c0_i32_0 : i32, i32
  }
  func.func @transform_13(%arg0: i32) -> (i32, i32) {
    %c0_i32 = arith.constant 0 : i32
    %c0_i32_0 = arith.constant 0 : i32
    %c0_i32_1 = arith.constant 0 : i32
    return %c0_i32, %c0_i32_0 : i32, i32
  }
  func.func @transform_14(%arg0: i32) -> (i32, i32) {
    %c0_i32 = arith.constant 0 : i32
    %c0_i32_0 = arith.constant 0 : i32
    %c0_i32_1 = arith.constant 0 : i32
    return %c0_i32, %c0_i32_0 : i32, i32
  }
  func.func @transform_15(%arg0: i32) -> (i32, i32) {
    %c0_i32 = arith.constant 0 : i32
    %c0_i32_0 = arith.constant 0 : i32
    %c0_i32_1 = arith.constant 0 : i32
    return %c0_i32, %c0_i32_0 : i32, i32
  }
  func.func @transform_16(%arg0: i32) -> (i32, i32) {
    %c0_i32 = arith.constant 0 : i32
    %c0_i32_0 = arith.constant 0 : i32
    %c0_i32_1 = arith.constant 0 : i32
    return %c0_i32, %c0_i32_0 : i32, i32
  }
  func.func @transform_17(%arg0: i32) -> (i32, i32) {
    %c0_i32 = arith.constant 0 : i32
    %c0_i32_0 = arith.constant 0 : i32
    %c0_i32_1 = arith.constant 0 : i32
    return %c0_i32, %c0_i32_0 : i32, i32
  }
  func.func @transform_18(%arg0: i32) -> (i32, i32) {
    %c0_i32 = arith.constant 0 : i32
    %c0_i32_0 = arith.constant 0 : i32
    %c0_i32_1 = arith.constant 0 : i32
    return %c0_i32, %c0_i32_0 : i32, i32
  }
  func.func @transform_19(%arg0: i32) -> (i32, i32) {
    %c0_i32 = arith.constant 0 : i32
    %c0_i32_0 = arith.constant 0 : i32
    %c0_i32_1 = arith.constant 0 : i32
    return %c0_i32, %c0_i32_0 : i32, i32
  }
  func.func @transform_20(%arg0: i32) -> (i32, i32) {
    %c0_i32 = arith.constant 0 : i32
    %c0_i32_0 = arith.constant 0 : i32
    return %arg0, %c0_i32 : i32, i32
  }
}

</mosaic_0001>

<llo_original>
// kernel: tpu_custom_call.1
$region0: #{tpu_custom_call.1}
  #allocation0 [shape = 'u32[]', space=smem, size = 0x4, offset = 0x4, fixed_abs, tag = 'smem constant byte address 0x4 - core index']
  #allocation1 [shape = 'u32[144,128]{1,0:T(1,128)}', space=vmem, size = 0x12000, scoped, tag = 'internal scratch']
  %s0 = inlined_call_operand.vmem [shape: bf16[8,256], index: 0, kind: input, shape index: {}]
  %s1 = inlined_call_operand.vmem [shape: f32[8,2], index: 1, kind: input, shape index: {}]
  %s2 = inlined_call_operand.vmem [shape: f32[2,128], index: 2, kind: input, shape index: {}]
  %s3 = inlined_call_operand.vmem [shape: f32[1,128], index: 3, kind: input, shape index: {}]
  %s4 = inlined_call_operand.hbm [shape: bf16[256,128], index: 4, kind: input, shape index: {}]
  %s5 = inlined_call_operand.vmem [shape: f32[1,128], index: 5, kind: input, shape index: {}]
  %s6 = inlined_call_operand.hbm [shape: bf16[128,128], index: 6, kind: input, shape index: {}]
  %s7 = inlined_call_operand.hbm [shape: f32[1,128], index: 7, kind: input, shape index: {}]
  %s8 = inlined_call_operand.hbm [shape: bf16[128,128], index: 8, kind: input, shape index: {}]
  %s9 = inlined_call_operand.hbm [shape: f32[1,128], index: 9, kind: input, shape index: {}]
  %s10 = inlined_call_operand.hbm [shape: bf16[256,128], index: 10, kind: input, shape index: {}]
  %s11 = inlined_call_operand.hbm [shape: f32[1,128], index: 11, kind: input, shape index: {}]
  %s12 = inlined_call_operand.hbm [shape: bf16[128,128], index: 12, kind: input, shape index: {}]
  %s13 = inlined_call_operand.hbm [shape: f32[1,128], index: 13, kind: input, shape index: {}]
  %s14 = inlined_call_operand.hbm [shape: bf16[128,128], index: 14, kind: input, shape index: {}]
  %s15 = inlined_call_operand.hbm [shape: f32[1,128], index: 15, kind: input, shape index: {}]
  %s16 = inlined_call_operand.hbm [shape: bf16[256,128], index: 16, kind: input, shape index: {}]
  %s17 = inlined_call_operand.hbm [shape: f32[1,128], index: 17, kind: input, shape index: {}]
  %s18 = inlined_call_operand.vmem [shape: bf16[128,128], index: 18, kind: input, shape index: {}]
  %s19 = inlined_call_operand.vmem [shape: f32[1,128], index: 19, kind: input, shape index: {}]
  %s20 = inlined_call_operand.hbm [shape: f32[8,128], index: 20, kind: output, shape index: {}]
  %s21 = sld [smem:[#allocation0]]
  $region142: #{tpu_custom_call.1} parent=0
    _
  %s23 = ssub.s32 1, %s21
  %s24 = scalar_select 0, %s23, %s21
  $region1: #{tpu_custom_call.1} parent=0
    #allocation2 [shape = 'u8[65536]{0}', space=vmem, size = 0x10000, scoped, tag = 'input window, operand 4, single buffered']
    #allocation3 [shape = 's32[1]{0}', space=sflag, size = 0x4, scoped, tag = 'scoped memory for tpu_custom_call.1']
    #allocation4 [shape = 's32[1]{0}', space=sflag, size = 0x4, scoped, tag = 'scoped memory for tpu_custom_call.1']
    #allocation5 [shape = 'u8[32768]{0}', space=vmem, size = 0x8000, scoped, tag = 'input window, operand 6, single buffered']
    #allocation6 [shape = 's32[1]{0}', space=sflag, size = 0x4, scoped, tag = 'scoped memory for tpu_custom_call.1']
    #allocation7 [shape = 'u8[512]{0}', space=vmem, size = 0x400, scoped, tag = 'input window, operand 7, single buffered']
    #allocation8 [shape = 'u8[32768]{0}', space=vmem, size = 0x8000, scoped, tag = 'input window, operand 8, single buffered']
    #allocation9 [shape = 's32[1]{0}', space=sflag, size = 0x4, scoped, tag = 'scoped memory for tpu_custom_call.1']
    #allocation10 [shape = 'u8[512]{0}', space=vmem, size = 0x400, scoped, tag = 'input window, operand 9, single buffered']
    #allocation11 [shape = 'u8[65536]{0}', space=vmem, size = 0x10000, scoped, tag = 'input window, operand 10, single buffered']
    #allocation12 [shape = 's32[1]{0}', space=sflag, size = 0x4, scoped, tag = 'scoped memory for tpu_custom_call.1']
    #allocation13 [shape = 'u8[512]{0}', space=vmem, size = 0x400, scoped, tag = 'input window, operand 11, single buffered']
    #allocation14 [shape = 'u8[32768]{0}', space=vmem, size = 0x8000, scoped, tag = 'input window, operand 12, single buffered']
    #allocation15 [shape = 's32[1]{0}', space=sflag, size = 0x4, scoped, tag = 'scoped memory for tpu_custom_call.1']
    #allocation16 [shape = 'u8[512]{0}', space=vmem, size = 0x400, scoped, tag = 'input window, operand 13, single buffered']
    #allocation17 [shape = 'u8[32768]{0}', space=vmem, size = 0x8000, scoped, tag = 'input window, operand 14, single buffered']
    #allocation18 [shape = 's32[1]{0}', space=sflag, size = 0x4, scoped, tag = 'scoped memory for tpu_custom_call.1']
    #allocation19 [shape = 'u8[512]{0}', space=vmem, size = 0x400, scoped, tag = 'input window, operand 15, single buffered']
    #allocation20 [shape = 'u8[65536]{0}', space=vmem, size = 0x10000, scoped, tag = 'input window, operand 16, single buffered']
    #allocation21 [shape = 's32[1]{0}', space=sflag, size = 0x4, scoped, tag = 'scoped memory for tpu_custom_call.1']
    #allocation22 [shape = 'u8[512]{0}', space=vmem, size = 0x400, scoped, tag = 'input window, operand 17, single buffered']
    #allocation23 [shape = 'u8[4096]{0}', space=vmem, size = 0x1000, scoped, tag = 'output window, operand 0, single buffered']
    %25 = vsyncpa [#allocation3], 0
    %26 = vsyncpa [#allocation6], 0
    %27 = vsyncpa [#allocation9], 0
    %28 = vsyncpa [#allocation12], 0
    %29 = vsyncpa [#allocation15], 0
    %30 = vsyncpa [#allocation18], 0
    %31 = vsyncpa [#allocation21], 0
    %32 = vsyncpa [#allocation4], 0
    // Predicated region
    $region2: #{tpu_custom_call.1} parent=1 // pred_check
      _
    $region3: #{tpu_custom_call.1} parent=1 // pred_check_branch
      %34 = sbr.rel (0) target = $region5
    $region4: #{tpu_custom_call.1} parent=1 // pred_region
      _
    $region5: #{tpu_custom_call.1} parent=1 // pred_fallthru
      _
    // Predicated region
    $region6: #{tpu_custom_call.1} parent=1 // pred_check
      _
    $region7: #{tpu_custom_call.1} parent=1 // pred_check_branch
      %36 = sbr.rel (0) target = $region9
    $region8: #{tpu_custom_call.1} parent=1 // pred_region
      _
    $region9: #{tpu_custom_call.1} parent=1 // pred_fallthru
      _
    // Predicated region
    $region10: #{tpu_custom_call.1} parent=1 // pred_check
      _
    $region11: #{tpu_custom_call.1} parent=1 // pred_check_branch
      %38 = sbr.rel (0) target = $region13
    $region12: #{tpu_custom_call.1} parent=1 // pred_region
      _
    $region13: #{tpu_custom_call.1} parent=1 // pred_fallthru
      _
    // Predicated region
    $region14: #{tpu_custom_call.1} parent=1 // pred_check
      _
    $region15: #{tpu_custom_call.1} parent=1 // pred_check_branch
      %40 = sbr.rel (0) target = $region17
    $region16: #{tpu_custom_call.1} parent=1 // pred_region
      _
    $region17: #{tpu_custom_call.1} parent=1 // pred_fallthru
      _
    // Predicated region
    $region18: #{tpu_custom_call.1} parent=1 // pred_check
      _
    $region19: #{tpu_custom_call.1} parent=1 // pred_check_branch
      %42 = sbr.rel (0) target = $region21
    $region20: #{tpu_custom_call.1} parent=1 // pred_region
      %s44 = ssub.s32 2048, 2048
      %45 = vsyncadd [#allocation3], %s44
      %s46 = sshll.u32 [#allocation2], 4
      %s47 = int_to_ptr.vmem [resolvable:$true] %s46
      %52 = dma.hbm_to_vmem [thread:$0]  %s4, 2048, %s47, [#allocation3], 64, 64, 4
    $region21: #{tpu_custom_call.1} parent=1 // pred_fallthru
      _
    // Predicated region
    $region22: #{tpu_custom_call.1} parent=1 // pred_check
      _
    $region23: #{tpu_custom_call.1} parent=1 // pred_check_branch
      %54 = sbr.rel (0) target = $region25
    $region24: #{tpu_custom_call.1} parent=1 // pred_region
      _
    $region25: #{tpu_custom_call.1} parent=1 // pred_fallthru
      _
    // Predicated region
    $region26: #{tpu_custom_call.1} parent=1 // pred_check
      _
    $region27: #{tpu_custom_call.1} parent=1 // pred_check_branch
      %56 = sbr.rel (0) target = $region29
    $region28: #{tpu_custom_call.1} parent=1 // pred_region
      %s58 = ssub.s32 1024, 1024
      %59 = vsyncadd [#allocation6], %s58
      %s60 = sshll.u32 [#allocation5], 4
      %s61 = int_to_ptr.vmem [resolvable:$true] %s60
      %66 = dma.hbm_to_vmem [thread:$0]  %s6, 1024, %s61, [#allocation6], 64, 64, 4
    $region29: #{tpu_custom_call.1} parent=1 // pred_fallthru
      _
    // Predicated region
    $region30: #{tpu_custom_call.1} parent=1 // pred_check
      _
    $region31: #{tpu_custom_call.1} parent=1 // pred_check_branch
      %68 = sbr.rel (0) target = $region33
    $region32: #{tpu_custom_call.1} parent=1 // pred_region
      %s70 = ssub.s32 16, 16
      %71 = vsyncadd [#allocation6], %s70
      %s73 = sshll.u32 [#allocation7], 4
      %s74 = int_to_ptr.vmem [resolvable:$true] %s73
      %76 = dma.hbm_to_vmem [thread:$0]  %s7, 16, %s74, [#allocation6]
    $region33: #{tpu_custom_call.1} parent=1 // pred_fallthru
      _
    // Predicated region
    $region34: #{tpu_custom_call.1} parent=1 // pred_check
      _
    $region35: #{tpu_custom_call.1} parent=1 // pred_check_branch
      %78 = sbr.rel (0) target = $region37
    $region36: #{tpu_custom_call.1} parent=1 // pred_region
      %s80 = ssub.s32 1024, 1024
      %81 = vsyncadd [#allocation9], %s80
      %s82 = sshll.u32 [#allocation8], 4
      %s83 = int_to_ptr.vmem [resolvable:$true] %s82
      %88 = dma.hbm_to_vmem [thread:$0]  %s8, 1024, %s83, [#allocation9], 64, 64, 4
    $region37: #{tpu_custom_call.1} parent=1 // pred_fallthru
      _
    // Predicated region
    $region38: #{tpu_custom_call.1} parent=1 // pred_check
      _
    $region39: #{tpu_custom_call.1} parent=1 // pred_check_branch
      %90 = sbr.rel (0) target = $region41
    $region40: #{tpu_custom_call.1} parent=1 // pred_region
      %s92 = ssub.s32 16, 16
      %93 = vsyncadd [#allocation9], %s92
      %s95 = sshll.u32 [#allocation10], 4
      %s96 = int_to_ptr.vmem [resolvable:$true] %s95
      %98 = dma.hbm_to_vmem [thread:$0]  %s9, 16, %s96, [#allocation9]
    $region41: #{tpu_custom_call.1} parent=1 // pred_fallthru
      _
    // Predicated region
    $region42: #{tpu_custom_call.1} parent=1 // pred_check
      _
    $region43: #{tpu_custom_call.1} parent=1 // pred_check_branch
      %100 = sbr.rel (0) target = $region45
    $region44: #{tpu_custom_call.1} parent=1 // pred_region
      %s102 = ssub.s32 2048, 2048
      %103 = vsyncadd [#allocation12], %s102
      %s104 = sshll.u32 [#allocation11], 4
      %s105 = int_to_ptr.vmem [resolvable:$true] %s104
      %110 = dma.hbm_to_vmem [thread:$0]  %s10, 2048, %s105, [#allocation12], 64, 64, 4
    $region45: #{tpu_custom_call.1} parent=1 // pred_fallthru
      _
    // Predicated region
    $region46: #{tpu_custom_call.1} parent=1 // pred_check
      _
    $region47: #{tpu_custom_call.1} parent=1 // pred_check_branch
      %112 = sbr.rel (0) target = $region49
    $region48: #{tpu_custom_call.1} parent=1 // pred_region
      %s114 = ssub.s32 16, 16
      %115 = vsyncadd [#allocation12], %s114
      %s117 = sshll.u32 [#allocation13], 4
      %s118 = int_to_ptr.vmem [resolvable:$true] %s117
      %120 = dma.hbm_to_vmem [thread:$0]  %s11, 16, %s118, [#allocation12]
    $region49: #{tpu_custom_call.1} parent=1 // pred_fallthru
      _
    // Predicated region
    $region50: #{tpu_custom_call.1} parent=1 // pred_check
      _
    $region51: #{tpu_custom_call.1} parent=1 // pred_check_branch
      %122 = sbr.rel (0) target = $region53
    $region52: #{tpu_custom_call.1} parent=1 // pred_region
      %s124 = ssub.s32 1024, 1024
      %125 = vsyncadd [#allocation15], %s124
      %s126 = sshll.u32 [#allocation14], 4
      %s127 = int_to_ptr.vmem [resolvable:$true] %s126
      %132 = dma.hbm_to_vmem [thread:$0]  %s12, 1024, %s127, [#allocation15], 64, 64, 4
    $region53: #{tpu_custom_call.1} parent=1 // pred_fallthru
      _
    // Predicated region
    $region54: #{tpu_custom_call.1} parent=1 // pred_check
      _
    $region55: #{tpu_custom_call.1} parent=1 // pred_check_branch
      %134 = sbr.rel (0) target = $region57
    $region56: #{tpu_custom_call.1} parent=1 // pred_region
      %s136 = ssub.s32 16, 16
      %137 = vsyncadd [#allocation15], %s136
      %s139 = sshll.u32 [#allocation16], 4
      %s140 = int_to_ptr.vmem [resolvable:$true] %s139
      %142 = dma.hbm_to_vmem [thread:$0]  %s13, 16, %s140, [#allocation15]
    $region57: #{tpu_custom_call.1} parent=1 // pred_fallthru
      _
    // Predicated region
    $region58: #{tpu_custom_call.1} parent=1 // pred_check
      _
    $region59: #{tpu_custom_call.1} parent=1 // pred_check_branch
      %144 = sbr.rel (0) target = $region61
    $region60: #{tpu_custom_call.1} parent=1 // pred_region
      %s146 = ssub.s32 1024, 1024
      %147 = vsyncadd [#allocation18], %s146
      %s148 = sshll.u32 [#allocation17], 4
      %s149 = int_to_ptr.vmem [resolvable:$true] %s148
      %154 = dma.hbm_to_vmem [thread:$0]  %s14, 1024, %s149, [#allocation18], 64, 64, 4
    $region61: #{tpu_custom_call.1} parent=1 // pred_fallthru
      _
    // Predicated region
    $region62: #{tpu_custom_call.1} parent=1 // pred_check
      _
    $region63: #{tpu_custom_call.1} parent=1 // pred_check_branch
      %156 = sbr.rel (0) target = $region65
    $region64: #{tpu_custom_call.1} parent=1 // pred_region
      %s158 = ssub.s32 16, 16
      %159 = vsyncadd [#allocation18], %s158
      %s161 = sshll.u32 [#allocation19], 4
      %s162 = int_to_ptr.vmem [resolvable:$true] %s161
      %164 = dma.hbm_to_vmem [thread:$0]  %s15, 16, %s162, [#allocation18]
    $region65: #{tpu_custom_call.1} parent=1 // pred_fallthru
      _
    // Predicated region
    $region66: #{tpu_custom_call.1} parent=1 // pred_check
      _
    $region67: #{tpu_custom_call.1} parent=1 // pred_check_branch
      %166 = sbr.rel (0) target = $region69
    $region68: #{tpu_custom_call.1} parent=1 // pred_region
      %s168 = ssub.s32 2048, 2048
      %169 = vsyncadd [#allocation21], %s168
      %s170 = sshll.u32 [#allocation20], 4
      %s171 = int_to_ptr.vmem [resolvable:$true] %s170
      %176 = dma.hbm_to_vmem [thread:$0]  %s16, 2048, %s171, [#allocation21], 64, 64, 4
    $region69: #{tpu_custom_call.1} parent=1 // pred_fallthru
      _
    // Predicated region
    $region70: #{tpu_custom_call.1} parent=1 // pred_check
      _
    $region71: #{tpu_custom_call.1} parent=1 // pred_check_branch
      %178 = sbr.rel (0) target = $region73
    $region72: #{tpu_custom_call.1} parent=1 // pred_region
      %s180 = ssub.s32 16, 16
      %181 = vsyncadd [#allocation21], %s180
      %s183 = sshll.u32 [#allocation22], 4
      %s184 = int_to_ptr.vmem [resolvable:$true] %s183
      %186 = dma.hbm_to_vmem [thread:$0]  %s17, 16, %s184, [#allocation21]
    $region73: #{tpu_custom_call.1} parent=1 // pred_fallthru
      _
    // Predicated region
    $region74: #{tpu_custom_call.1} parent=1 // pred_check
      _
    $region75: #{tpu_custom_call.1} parent=1 // pred_check_branch
      %188 = sbr.rel (0) target = $region77
    $region76: #{tpu_custom_call.1} parent=1 // pred_region
      _
    $region77: #{tpu_custom_call.1} parent=1 // pred_fallthru
      _
    // Predicated region
    $region78: #{tpu_custom_call.1} parent=1 // pred_check
      _
    $region79: #{tpu_custom_call.1} parent=1 // pred_check_branch
      %190 = sbr.rel (0) target = $region81
    $region80: #{tpu_custom_call.1} parent=1 // pred_region
      _
    $region81: #{tpu_custom_call.1} parent=1 // pred_fallthru
      _
    // Predicated region
    $region82: #{tpu_custom_call.1} parent=1 // pred_check
      _
    $region83: #{tpu_custom_call.1} parent=1 // pred_check_branch
      %192 = sbr.rel (0) target = $region85
    $region84: #{tpu_custom_call.1} parent=1 // pred_region
      %193 = dma.done [#allocation3], 2048
    $region85: #{tpu_custom_call.1} parent=1 // pred_fallthru
      _
    // Predicated region
    $region86: #{tpu_custom_call.1} parent=1 // pred_check
      _
    $region87: #{tpu_custom_call.1} parent=1 // pred_check_branch
      %195 = sbr.rel (0) target = $region89
    $region88: #{tpu_custom_call.1} parent=1 // pred_region
      %196 = dma.done [#allocation6], 1024
    $region89: #{tpu_custom_call.1} parent=1 // pred_fallthru
      _
    // Predicated region
    $region90: #{tpu_custom_call.1} parent=1 // pred_check
      _
    $region91: #{tpu_custom_call.1} parent=1 // pred_check_branch
      %198 = sbr.rel (0) target = $region93
    $region92: #{tpu_custom_call.1} parent=1 // pred_region
      %199 = dma.done [#allocation6], 16
    $region93: #{tpu_custom_call.1} parent=1 // pred_fallthru
      _
    // Predicated region
    $region94: #{tpu_custom_call.1} parent=1 // pred_check
      _
    $region95: #{tpu_custom_call.1} parent=1 // pred_check_branch
      %201 = sbr.rel (0) target = $region97
    $region96: #{tpu_custom_call.1} parent=1 // pred_region
      %202 = dma.done [#allocation9], 1024
    $region97: #{tpu_custom_call.1} parent=1 // pred_fallthru
      _
    // Predicated region
    $region98: #{tpu_custom_call.1} parent=1 // pred_check
      _
    $region99: #{tpu_custom_call.1} parent=1 // pred_check_branch
      %204 = sbr.rel (0) target = $region101
    $region100: #{tpu_custom_call.1} parent=1 // pred_region
      %205 = dma.done [#allocation9], 16
    $region101: #{tpu_custom_call.1} parent=1 // pred_fallthru
      _
    // Predicated region
    $region102: #{tpu_custom_call.1} parent=1 // pred_check
      _
    $region103: #{tpu_custom_call.1} parent=1 // pred_check_branch
      %207 = sbr.rel (0) target = $region105
    $region104: #{tpu_custom_call.1} parent=1 // pred_region
      %208 = dma.done [#allocation12], 2048
    $region105: #{tpu_custom_call.1} parent=1 // pred_fallthru
      _
    // Predicated region
    $region106: #{tpu_custom_call.1} parent=1 // pred_check
      _
    $region107: #{tpu_custom_call.1} parent=1 // pred_check_branch
      %210 = sbr.rel (0) target = $region109
    $region108: #{tpu_custom_call.1} parent=1 // pred_region
      %211 = dma.done [#allocation12], 16
    $region109: #{tpu_custom_call.1} parent=1 // pred_fallthru
      _
    // Predicated region
    $region110: #{tpu_custom_call.1} parent=1 // pred_check
      _
    $region111: #{tpu_custom_call.1} parent=1 // pred_check_branch
      %213 = sbr.rel (0) target = $region113
    $region112: #{tpu_custom_call.1} parent=1 // pred_region
      %214 = dma.done [#allocation15], 1024
    $region113: #{tpu_custom_call.1} parent=1 // pred_fallthru
      _
    // Predicated region
    $region114: #{tpu_custom_call.1} parent=1 // pred_check
      _
    $region115: #{tpu_custom_call.1} parent=1 // pred_check_branch
      %216 = sbr.rel (0) target = $region117
    $region116: #{tpu_custom_call.1} parent=1 // pred_region
      %217 = dma.done [#allocation15], 16
    $region117: #{tpu_custom_call.1} parent=1 // pred_fallthru
      _
    // Predicated region
    $region118: #{tpu_custom_call.1} parent=1 // pred_check
      _
    $region119: #{tpu_custom_call.1} parent=1 // pred_check_branch
      %219 = sbr.rel (0) target = $region121
    $region120: #{tpu_custom_call.1} parent=1 // pred_region
      %220 = dma.done [#allocation18], 1024
    $region121: #{tpu_custom_call.1} parent=1 // pred_fallthru
      _
    // Predicated region
    $region122: #{tpu_custom_call.1} parent=1 // pred_check
      _
    $region123: #{tpu_custom_call.1} parent=1 // pred_check_branch
      %222 = sbr.rel (0) target = $region125
    $region124: #{tpu_custom_call.1} parent=1 // pred_region
      %223 = dma.done [#allocation18], 16
    $region125: #{tpu_custom_call.1} parent=1 // pred_fallthru
      _
    // Predicated region
    $region126: #{tpu_custom_call.1} parent=1 // pred_check
      _
    $region127: #{tpu_custom_call.1} parent=1 // pred_check_branch
      %225 = sbr.rel (0) target = $region129
    $region128: #{tpu_custom_call.1} parent=1 // pred_region
      %226 = dma.done [#allocation21], 2048
    $region129: #{tpu_custom_call.1} parent=1 // pred_fallthru
      _
    // Predicated region
    $region130: #{tpu_custom_call.1} parent=1 // pred_check
      _
    $region131: #{tpu_custom_call.1} parent=1 // pred_check_branch
      %228 = sbr.rel (0) target = $region133
    $region132: #{tpu_custom_call.1} parent=1 // pred_region
      %229 = dma.done [#allocation21], 16
    $region133: #{tpu_custom_call.1} parent=1 // pred_fallthru
      _
    %v231 = vld [vmem:[%s0] sm:$0xff]
    %v232 = vld [vmem:[%s1] sm:$0xff]
    %v233 = vld [vmem:[#allocation2] sm:$0xf]
    %v234 = vld [vmem:[#allocation2 + $0x4] sm:$0xf]
    %v235 = vld [vmem:[#allocation2 + $0x8] sm:$0xf]
    %v236 = vld [vmem:[#allocation2 + $0xc] sm:$0xf]
    %v237 = vld [vmem:[#allocation2 + $0x10] sm:$0xf]
    %v238 = vld [vmem:[#allocation2 + $0x14] sm:$0xf]
    %v239 = vld [vmem:[#allocation2 + $0x18] sm:$0xf]
    %v240 = vld [vmem:[#allocation2 + $0x1c] sm:$0xf]
    %v241 = vld [vmem:[#allocation2 + $0x20] sm:$0xf]
    %v242 = vld [vmem:[#allocation2 + $0x24] sm:$0xf]
    %v243 = vld [vmem:[#allocation2 + $0x28] sm:$0xf]
    %v244 = vld [vmem:[#allocation2 + $0x2c] sm:$0xf]
    %v245 = vld [vmem:[#allocation2 + $0x30] sm:$0xf]
    %v246 = vld [vmem:[#allocation2 + $0x34] sm:$0xf]
    %v247 = vld [vmem:[#allocation2 + $0x38] sm:$0xf]
    %v248 = vld [vmem:[#allocation2 + $0x3c] sm:$0xf]
    %v249 = vld [vmem:[#allocation2 + $0x40] sm:$0xf]
    %v250 = vld [vmem:[#allocation2 + $0x44] sm:$0xf]
    %v251 = vld [vmem:[#allocation2 + $0x48] sm:$0xf]
    %v252 = vld [vmem:[#allocation2 + $0x4c] sm:$0xf]
    %v253 = vld [vmem:[#allocation2 + $0x50] sm:$0xf]
    %v254 = vld [vmem:[#allocation2 + $0x54] sm:$0xf]
    %v255 = vld [vmem:[#allocation2 + $0x58] sm:$0xf]
    %v256 = vld [vmem:[#allocation2 + $0x5c] sm:$0xf]
    %v257 = vld [vmem:[#allocation2 + $0x60] sm:$0xf]
    %v258 = vld [vmem:[#allocation2 + $0x64] sm:$0xf]
    %v259 = vld [vmem:[#allocation2 + $0x68] sm:$0xf]
    %v260 = vld [vmem:[#allocation2 + $0x6c] sm:$0xf]
    %v261 = vld [vmem:[#allocation2 + $0x70] sm:$0xf]
    %v262 = vld [vmem:[#allocation2 + $0x74] sm:$0xf]
    %v263 = vld [vmem:[#allocation2 + $0x78] sm:$0xf]
    %v264 = vld [vmem:[#allocation2 + $0x7c] sm:$0xf]
    %v265 = vld [vmem:[%s5] sm:$0x1]
    %v267 = vlaneseq
    %v268 = vshrl.u32 %v267, 7
    %v269 = vsub.s32 0, %v268
    %v270 = vrot.slane %v265, %v269
    %v273 = vunpack.c.l.b16 %v231
    %v274 = vunpack.c.h.b16 %v231
    %v275 = vpack.c.b16 %v273, %v273
    %v276 = vpack.c.b16 %v274, %v274
    %v311 = vunpack.c.l.b16 %v233
    %v312 = vunpack.c.l.b16 %v234
    %v313 = vunpack.c.l.b16 %v235
    %v314 = vunpack.c.l.b16 %v236
    %v315 = vunpack.c.l.b16 %v237
    %v316 = vunpack.c.l.b16 %v238
    %v317 = vunpack.c.l.b16 %v239
    %v318 = vunpack.c.l.b16 %v240
    %v319 = vunpack.c.l.b16 %v241
    %v320 = vunpack.c.l.b16 %v242
    %v321 = vunpack.c.l.b16 %v243
    %v322 = vunpack.c.l.b16 %v244
    %v323 = vunpack.c.l.b16 %v245
    %v324 = vunpack.c.l.b16 %v246
    %v325 = vunpack.c.l.b16 %v247
    %v326 = vunpack.c.l.b16 %v248
    %v327 = vunpack.c.l.b16 %v249
    %v328 = vunpack.c.l.b16 %v250
    %v329 = vunpack.c.l.b16 %v251
    %v330 = vunpack.c.l.b16 %v252
    %v331 = vunpack.c.l.b16 %v253
    %v332 = vunpack.c.l.b16 %v254
    %v333 = vunpack.c.l.b16 %v255
    %v334 = vunpack.c.l.b16 %v256
    %v335 = vunpack.c.l.b16 %v257
    %v336 = vunpack.c.l.b16 %v258
    %v337 = vunpack.c.l.b16 %v259
    %v338 = vunpack.c.l.b16 %v260
    %v339 = vunpack.c.l.b16 %v261
    %v340 = vunpack.c.l.b16 %v262
    %v341 = vunpack.c.l.b16 %v263
    %v342 = vunpack.c.l.b16 %v264
    %v343 = vpack.c.b16 %v312, %v311
    %v344 = vpack.c.b16 %v314, %v313
    %v345 = vpack.c.b16 %v316, %v315
    %v346 = vpack.c.b16 %v318, %v317
    %v347 = vpack.c.b16 %v320, %v319
    %v348 = vpack.c.b16 %v322, %v321
    %v349 = vpack.c.b16 %v324, %v323
    %v350 = vpack.c.b16 %v326, %v325
    %v351 = vpack.c.b16 %v328, %v327
    %v352 = vpack.c.b16 %v330, %v329
    %v353 = vpack.c.b16 %v332, %v331
    %v354 = vpack.c.b16 %v334, %v333
    %v355 = vpack.c.b16 %v336, %v335
    %v356 = vpack.c.b16 %v338, %v337
    %v357 = vpack.c.b16 %v340, %v339
    %v358 = vpack.c.b16 %v342, %v341
    %375 = vmatprep.subr.bf16.mxu0 0
    %376 = vmatpush1.bf16.msra.mxu0 %v343
    %377 = vmatprep.subr.bf16.mxu0 0
    %378 = vmatpush1.bf16.msra.mxu0 %v344
    %379 = vmatprep.subr.bf16.mxu0 0
    %380 = vmatpush1.bf16.msra.mxu0 %v345
    %381 = vmatprep.subr.bf16.mxu0 0
    %382 = vmatpush1.bf16.msra.mxu0 %v346
    %383 = vmatprep.subr.bf16.mxu0 0
    %384 = vmatpush1.bf16.msra.mxu0 %v347
    %385 = vmatprep.subr.bf16.mxu0 0
    %386 = vmatpush1.bf16.msra.mxu0 %v348
    %387 = vmatprep.subr.bf16.mxu0 0
    %388 = vmatpush1.bf16.msra.mxu0 %v349
    %389 = vmatprep.subr.bf16.mxu0 0
    %390 = vmatpush1.bf16.msra.mxu0 %v350
    %391 = vmatprep.subr.bf16.mxu0 0
    %392 = vmatpush1.bf16.msra.mxu0 %v351
    %393 = vmatprep.subr.bf16.mxu0 0
    %394 = vmatpush1.bf16.msra.mxu0 %v352
    %395 = vmatprep.subr.bf16.mxu0 0
    %396 = vmatpush1.bf16.msra.mxu0 %v353
    %397 = vmatprep.subr.bf16.mxu0 0
    %398 = vmatpush1.bf16.msra.mxu0 %v354
    %399 = vmatprep.subr.bf16.mxu0 0
    %400 = vmatpush1.bf16.msra.mxu0 %v355
    %401 = vmatprep.subr.bf16.mxu0 0
    %402 = vmatpush1.bf16.msra.mxu0 %v356
    %403 = vmatprep.subr.bf16.mxu0 0
    %404 = vmatpush1.bf16.msra.mxu0 %v357
    %405 = vmatprep.subr.bf16.mxu0 0
    %406 = vmatpush1.bf16.msra.mxu0 %v358
    %407 = vmatprep.mubr.bf16.mxu0 %v276
    %408 = vmatmul.mubr.bf16.gmra.mrb[0].mxu0 %v275
    %v409 = vpop.f32.mrb[0].mxu0
    %v410 = vadd.f32 %v270, %v409
    %v411 = vpop.f32.mrb[0].mxu0
    %v412 = vpop.f32.mrb[0].mxu0
    %v413 = vpop.f32.mrb[0].mxu0
    %414 = vdwg.mxu0
    %v415 = vsub.f32 0.0, %v410
    %v416 = vmul.f32 %v415, 1.442695
    %v417 = vpow.pop %v416
    %v418 = vadd.f32 %v417, 1.0
    %v419 = vrcp.pop %v418
    %v420 = vmul.f32 %v410, %v419
    %v421 = vpack.c.bf16 %v420, %v420
    %v422 = vld [vmem:[#allocation5] sm:$0xf]
    %v423 = vld [vmem:[#allocation5 + $0x4] sm:$0xf]
    %v424 = vld [vmem:[#allocation5 + $0x8] sm:$0xf]
    %v425 = vld [vmem:[#allocation5 + $0xc] sm:$0xf]
    %v426 = vld [vmem:[#allocation5 + $0x10] sm:$0xf]
    %v427 = vld [vmem:[#allocation5 + $0x14] sm:$0xf]
    %v428 = vld [vmem:[#allocation5 + $0x18] sm:$0xf]
    %v429 = vld [vmem:[#allocation5 + $0x1c] sm:$0xf]
    %v430 = vld [vmem:[#allocation5 + $0x20] sm:$0xf]
    %v431 = vld [vmem:[#allocation5 + $0x24] sm:$0xf]
    %v432 = vld [vmem:[#allocation5 + $0x28] sm:$0xf]
    %v433 = vld [vmem:[#allocation5 + $0x2c] sm:$0xf]
    %v434 = vld [vmem:[#allocation5 + $0x30] sm:$0xf]
    %v435 = vld [vmem:[#allocation5 + $0x34] sm:$0xf]
    %v436 = vld [vmem:[#allocation5 + $0x38] sm:$0xf]
    %v437 = vld [vmem:[#allocation5 + $0x3c] sm:$0xf]
    %v438 = vld [vmem:[#allocation7] sm:$0x1]
    %v440 = vlaneseq
    %v441 = vshrl.u32 %v440, 7
    %v442 = vsub.s32 0, %v441
    %v443 = vrot.slane %v438, %v442
    %v461 = vunpack.c.l.b16 %v422
    %v462 = vunpack.c.l.b16 %v423
    %v463 = vunpack.c.l.b16 %v424
    %v464 = vunpack.c.l.b16 %v425
    %v465 = vunpack.c.l.b16 %v426
    %v466 = vunpack.c.l.b16 %v427
    %v467 = vunpack.c.l.b16 %v428
    %v468 = vunpack.c.l.b16 %v429
    %v469 = vunpack.c.l.b16 %v430
    %v470 = vunpack.c.l.b16 %v431
    %v471 = vunpack.c.l.b16 %v432
    %v472 = vunpack.c.l.b16 %v433
    %v473 = vunpack.c.l.b16 %v434
    %v474 = vunpack.c.l.b16 %v435
    %v475 = vunpack.c.l.b16 %v436
    %v476 = vunpack.c.l.b16 %v437
    %v477 = vpack.c.b16 %v462, %v461
    %v478 = vpack.c.b16 %v464, %v463
    %v479 = vpack.c.b16 %v466, %v465
    %v480 = vpack.c.b16 %v468, %v467
    %v481 = vpack.c.b16 %v470, %v469
    %v482 = vpack.c.b16 %v472, %v471
    %v483 = vpack.c.b16 %v474, %v473
    %v484 = vpack.c.b16 %v476, %v475
    %493 = vmatprep.subr.bf16.mxu0 0
    %494 = vmatpush1.bf16.msra.mxu0 %v477
    %495 = vmatprep.subr.bf16.mxu0 0
    %496 = vmatpush1.bf16.msra.mxu0 %v478
    %497 = vmatprep.subr.bf16.mxu0 0
    %498 = vmatpush1.bf16.msra.mxu0 %v479
    %499 = vmatprep.subr.bf16.mxu0 0
    %500 = vmatpush1.bf16.msra.mxu0 %v480
    %501 = vmatprep.subr.bf16.mxu0 0
    %502 = vmatpush1.bf16.msra.mxu0 %v481
    %503 = vmatprep.subr.bf16.mxu0 0
    %504 = vmatpush1.bf16.msra.mxu0 %v482
    %505 = vmatprep.subr.bf16.mxu0 0
    %506 = vmatpush1.bf16.msra.mxu0 %v483
    %507 = vmatprep.subr.bf16.mxu0 0
    %508 = vmatpush1.bf16.msra.mxu0 %v484
    %509 = vmatprep.subr.bf16.mxu0 0
    %510 = vmatpush1.bf16.msra.mxu0 0
    %511 = vmatprep.subr.bf16.mxu0 0
    %512 = vmatpush1.bf16.msra.mxu0 0
    %513 = vmatprep.subr.bf16.mxu0 0
    %514 = vmatpush1.bf16.msra.mxu0 0
    %515 = vmatprep.subr.bf16.mxu0 0
    %516 = vmatpush1.bf16.msra.mxu0 0
    %517 = vmatprep.subr.bf16.mxu0 0
    %518 = vmatpush1.bf16.msra.mxu0 0
    %519 = vmatprep.subr.bf16.mxu0 0
    %520 = vmatpush1.bf16.msra.mxu0 0
    %521 = vmatprep.subr.bf16.mxu0 0
    %522 = vmatpush1.bf16.msra.mxu0 0
    %523 = vmatprep.subr.bf16.mxu0 0
    %524 = vmatpush1.bf16.msra.mxu0 0
    %525 = vmatprep.mubr.bf16.mxu0 0
    %526 = vmatmul.mubr.bf16.gmra.mrb[0].mxu0 %v421
    %v527 = vpop.f32.mrb[0].mxu0
    %v528 = vadd.f32 %v443, %v527
    %v529 = vpop.f32.mrb[0].mxu0
    %v530 = vpop.f32.mrb[0].mxu0
    %v531 = vpop.f32.mrb[0].mxu0
    %532 = vdwg.mxu0
    %v533 = vld [vmem:[%s2] sm:$0x3]
    %535 = vset.pattern.permute.xlu0 0
    %536 = vperm.xlu0 %535, %v232
    %v537 = vpop.permute.xlu0 %536
    %v539 = vlaneseq
    %v540 = vshrl.u32 %v539, 7
    %v541 = vsub.s32 0, %v540
    %v542 = vrot.slane %v533, %v541
    %v543 = vmul.f32 %v537, %v542
    %v544 = vld [vmem:[%s3] sm:$0x1]
    %v546 = vlaneseq
    %v547 = vshrl.u32 %v546, 7
    %v548 = vsub.s32 0, %v547
    %v549 = vrot.slane %v544, %v548
    %v551 = vadd.f32 %v543, %v549
    %552 = vset.pattern.permute.xlu0 1
    %553 = vperm.xlu0 %552, %v232
    %v554 = vpop.permute.xlu0 %553
    %v556 = vlaneseq
    %v557 = vshrl.u32 %v556, 7
    %v558 = vsub.s32 1, %v557
    %v559 = vrot.slane %v533, %v558
    %v560 = vmul.f32 %v554, %v559
    %v561 = vadd.f32 %v551, %v560
    %v562 = vmul.f32 %v528, %v561
    %v563 = vmax.f32 %v562, 0.0
    %v564 = vld [vmem:[#allocation11] sm:$0xf]
    %v565 = vld [vmem:[#allocation11 + $0x4] sm:$0xf]
    %v566 = vld [vmem:[#allocation11 + $0x8] sm:$0xf]
    %v567 = vld [vmem:[#allocation11 + $0xc] sm:$0xf]
    %v568 = vld [vmem:[#allocation11 + $0x10] sm:$0xf]
    %v569 = vld [vmem:[#allocation11 + $0x14] sm:$0xf]
    %v570 = vld [vmem:[#allocation11 + $0x18] sm:$0xf]
    %v571 = vld [vmem:[#allocation11 + $0x1c] sm:$0xf]
    %v572 = vld [vmem:[#allocation11 + $0x20] sm:$0xf]
    %v573 = vld [vmem:[#allocation11 + $0x24] sm:$0xf]
    %v574 = vld [vmem:[#allocation11 + $0x28] sm:$0xf]
    %v575 = vld [vmem:[#allocation11 + $0x2c] sm:$0xf]
    %v576 = vld [vmem:[#allocation11 + $0x30] sm:$0xf]
    %v577 = vld [vmem:[#allocation11 + $0x34] sm:$0xf]
    %v578 = vld [vmem:[#allocation11 + $0x38] sm:$0xf]
    %v579 = vld [vmem:[#allocation11 + $0x3c] sm:$0xf]
    %v580 = vld [vmem:[#allocation11 + $0x40] sm:$0xf]
    %v581 = vld [vmem:[#allocation11 + $0x44] sm:$0xf]
    %v582 = vld [vmem:[#allocation11 + $0x48] sm:$0xf]
    %v583 = vld [vmem:[#allocation11 + $0x4c] sm:$0xf]
    %v584 = vld [vmem:[#allocation11 + $0x50] sm:$0xf]
    %v585 = vld [vmem:[#allocation11 + $0x54] sm:$0xf]
    %v586 = vld [vmem:[#allocation11 + $0x58] sm:$0xf]
    %v587 = vld [vmem:[#allocation11 + $0x5c] sm:$0xf]
    %v588 = vld [vmem:[#allocation11 + $0x60] sm:$0xf]
    %v589 = vld [vmem:[#allocation11 + $0x64] sm:$0xf]
    %v590 = vld [vmem:[#allocation11 + $0x68] sm:$0xf]
    %v591 = vld [vmem:[#allocation11 + $0x6c] sm:$0xf]
    %v592 = vld [vmem:[#allocation11 + $0x70] sm:$0xf]
    %v593 = vld [vmem:[#allocation11 + $0x74] sm:$0xf]
    %v594 = vld [vmem:[#allocation11 + $0x78] sm:$0xf]
    %v595 = vld [vmem:[#allocation11 + $0x7c] sm:$0xf]
    %v596 = vld [vmem:[#allocation13] sm:$0x1]
    %v598 = vlaneseq
    %v599 = vshrl.u32 %v598, 7
    %v600 = vsub.s32 0, %v599
    %v601 = vrot.slane %v596, %v600
    %v635 = vunpack.c.l.b16 %v564
    %v636 = vunpack.c.l.b16 %v565
    %v637 = vunpack.c.l.b16 %v566
    %v638 = vunpack.c.l.b16 %v567
    %v639 = vunpack.c.l.b16 %v568
    %v640 = vunpack.c.l.b16 %v569
    %v641 = vunpack.c.l.b16 %v570
    %v642 = vunpack.c.l.b16 %v571
    %v643 = vunpack.c.l.b16 %v572
    %v644 = vunpack.c.l.b16 %v573
    %v645 = vunpack.c.l.b16 %v574
    %v646 = vunpack.c.l.b16 %v575
    %v647 = vunpack.c.l.b16 %v576
    %v648 = vunpack.c.l.b16 %v577
    %v649 = vunpack.c.l.b16 %v578
    %v650 = vunpack.c.l.b16 %v579
    %v651 = vunpack.c.l.b16 %v580
    %v652 = vunpack.c.l.b16 %v581
    %v653 = vunpack.c.l.b16 %v582
    %v654 = vunpack.c.l.b16 %v583
    %v655 = vunpack.c.l.b16 %v584
    %v656 = vunpack.c.l.b16 %v585
    %v657 = vunpack.c.l.b16 %v586
    %v658 = vunpack.c.l.b16 %v587
    %v659 = vunpack.c.l.b16 %v588
    %v660 = vunpack.c.l.b16 %v589
    %v661 = vunpack.c.l.b16 %v590
    %v662 = vunpack.c.l.b16 %v591
    %v663 = vunpack.c.l.b16 %v592
    %v664 = vunpack.c.l.b16 %v593
    %v665 = vunpack.c.l.b16 %v594
    %v666 = vunpack.c.l.b16 %v595
    %v667 = vpack.c.b16 %v636, %v635
    %v668 = vpack.c.b16 %v638, %v637
    %v669 = vpack.c.b16 %v640, %v639
    %v670 = vpack.c.b16 %v642, %v641
    %v671 = vpack.c.b16 %v644, %v643
    %v672 = vpack.c.b16 %v646, %v645
    %v673 = vpack.c.b16 %v648, %v647
    %v674 = vpack.c.b16 %v650, %v649
    %v675 = vpack.c.b16 %v652, %v651
    %v676 = vpack.c.b16 %v654, %v653
    %v677 = vpack.c.b16 %v656, %v655
    %v678 = vpack.c.b16 %v658, %v657
    %v679 = vpack.c.b16 %v660, %v659
    %v680 = vpack.c.b16 %v662, %v661
    %v681 = vpack.c.b16 %v664, %v663
    %v682 = vpack.c.b16 %v666, %v665
    %699 = vmatprep.subr.bf16.mxu0 0
    %700 = vmatpush1.bf16.msra.mxu0 %v667
    %701 = vmatprep.subr.bf16.mxu0 0
    %702 = vmatpush1.bf16.msra.mxu0 %v668
    %703 = vmatprep.subr.bf16.mxu0 0
    %704 = vmatpush1.bf16.msra.mxu0 %v669
    %705 = vmatprep.subr.bf16.mxu0 0
    %706 = vmatpush1.bf16.msra.mxu0 %v670
    %707 = vmatprep.subr.bf16.mxu0 0
    %708 = vmatpush1.bf16.msra.mxu0 %v671
    %709 = vmatprep.subr.bf16.mxu0 0
    %710 = vmatpush1.bf16.msra.mxu0 %v672
    %711 = vmatprep.subr.bf16.mxu0 0
    %712 = vmatpush1.bf16.msra.mxu0 %v673
    %713 = vmatprep.subr.bf16.mxu0 0
    %714 = vmatpush1.bf16.msra.mxu0 %v674
    %715 = vmatprep.subr.bf16.mxu0 0
    %716 = vmatpush1.bf16.msra.mxu0 %v675
    %717 = vmatprep.subr.bf16.mxu0 0
    %718 = vmatpush1.bf16.msra.mxu0 %v676
    %719 = vmatprep.subr.bf16.mxu0 0
    %720 = vmatpush1.bf16.msra.mxu0 %v677
    %721 = vmatprep.subr.bf16.mxu0 0
    %722 = vmatpush1.bf16.msra.mxu0 %v678
    %723 = vmatprep.subr.bf16.mxu0 0
    %724 = vmatpush1.bf16.msra.mxu0 %v679
    %725 = vmatprep.subr.bf16.mxu0 0
    %726 = vmatpush1.bf16.msra.mxu0 %v680
    %727 = vmatprep.subr.bf16.mxu0 0
    %728 = vmatpush1.bf16.msra.mxu0 %v681
    %729 = vmatprep.subr.bf16.mxu0 0
    %730 = vmatpush1.bf16.msra.mxu0 %v682
    %731 = vmatprep.mubr.bf16.mxu0 %v276
    %732 = vmatmul.mubr.bf16.gmra.mrb[0].mxu0 %v275
    %v733 = vpop.f32.mrb[0].mxu0
    %v734 = vadd.f32 %v601, %v733
    %v735 = vpop.f32.mrb[0].mxu0
    %v736 = vpop.f32.mrb[0].mxu0
    %v737 = vpop.f32.mrb[0].mxu0
    %738 = vdwg.mxu0
    %v739 = vsub.f32 0.0, %v734
    %v740 = vmul.f32 %v739, 1.442695
    %v741 = vpow.pop %v740
    %v742 = vadd.f32 %v741, 1.0
    %v743 = vrcp.pop %v742
    %v744 = vmul.f32 %v734, %v743
    %v745 = vpack.c.bf16 %v744, %v744
    %v746 = vld [vmem:[#allocation14] sm:$0xf]
    %v747 = vld [vmem:[#allocation14 + $0x4] sm:$0xf]
    %v748 = vld [vmem:[#allocation14 + $0x8] sm:$0xf]
    %v749 = vld [vmem:[#allocation14 + $0xc] sm:$0xf]
    %v750 = vld [vmem:[#allocation14 + $0x10] sm:$0xf]
    %v751 = vld [vmem:[#allocation14 + $0x14] sm:$0xf]
    %v752 = vld [vmem:[#allocation14 + $0x18] sm:$0xf]
    %v753 = vld [vmem:[#allocation14 + $0x1c] sm:$0xf]
    %v754 = vld [vmem:[#allocation14 + $0x20] sm:$0xf]
    %v755 = vld [vmem:[#allocation14 + $0x24] sm:$0xf]
    %v756 = vld [vmem:[#allocation14 + $0x28] sm:$0xf]
    %v757 = vld [vmem:[#allocation14 + $0x2c] sm:$0xf]
    %v758 = vld [vmem:[#allocation14 + $0x30] sm:$0xf]
    %v759 = vld [vmem:[#allocation14 + $0x34] sm:$0xf]
    %v760 = vld [vmem:[#allocation14 + $0x38] sm:$0xf]
    %v761 = vld [vmem:[#allocation14 + $0x3c] sm:$0xf]
    %v762 = vld [vmem:[#allocation16] sm:$0x1]
    %v764 = vlaneseq
    %v765 = vshrl.u32 %v764, 7
    %v766 = vsub.s32 0, %v765
    %v767 = vrot.slane %v762, %v766
    %v785 = vunpack.c.l.b16 %v746
    %v786 = vunpack.c.l.b16 %v747
    %v787 = vunpack.c.l.b16 %v748
    %v788 = vunpack.c.l.b16 %v749
    %v789 = vunpack.c.l.b16 %v750
    %v790 = vunpack.c.l.b16 %v751
    %v791 = vunpack.c.l.b16 %v752
    %v792 = vunpack.c.l.b16 %v753
    %v793 = vunpack.c.l.b16 %v754
    %v794 = vunpack.c.l.b16 %v755
    %v795 = vunpack.c.l.b16 %v756
    %v796 = vunpack.c.l.b16 %v757
    %v797 = vunpack.c.l.b16 %v758
    %v798 = vunpack.c.l.b16 %v759
    %v799 = vunpack.c.l.b16 %v760
    %v800 = vunpack.c.l.b16 %v761
    %v801 = vpack.c.b16 %v786, %v785
    %v802 = vpack.c.b16 %v788, %v787
    %v803 = vpack.c.b16 %v790, %v789
    %v804 = vpack.c.b16 %v792, %v791
    %v805 = vpack.c.b16 %v794, %v793
    %v806 = vpack.c.b16 %v796, %v795
    %v807 = vpack.c.b16 %v798, %v797
    %v808 = vpack.c.b16 %v800, %v799
    %817 = vmatprep.subr.bf16.mxu0 0
    %818 = vmatpush1.bf16.msra.mxu0 %v801
    %819 = vmatprep.subr.bf16.mxu0 0
    %820 = vmatpush1.bf16.msra.mxu0 %v802
    %821 = vmatprep.subr.bf16.mxu0 0
    %822 = vmatpush1.bf16.msra.mxu0 %v803
    %823 = vmatprep.subr.bf16.mxu0 0
    %824 = vmatpush1.bf16.msra.mxu0 %v804
    %825 = vmatprep.subr.bf16.mxu0 0
    %826 = vmatpush1.bf16.msra.mxu0 %v805
    %827 = vmatprep.subr.bf16.mxu0 0
    %828 = vmatpush1.bf16.msra.mxu0 %v806
    %829 = vmatprep.subr.bf16.mxu0 0
    %830 = vmatpush1.bf16.msra.mxu0 %v807
    %831 = vmatprep.subr.bf16.mxu0 0
    %832 = vmatpush1.bf16.msra.mxu0 %v808
    %833 = vmatprep.subr.bf16.mxu0 0
    %834 = vmatpush1.bf16.msra.mxu0 0
    %835 = vmatprep.subr.bf16.mxu0 0
    %836 = vmatpush1.bf16.msra.mxu0 0
    %837 = vmatprep.subr.bf16.mxu0 0
    %838 = vmatpush1.bf16.msra.mxu0 0
    %839 = vmatprep.subr.bf16.mxu0 0
    %840 = vmatpush1.bf16.msra.mxu0 0
    %841 = vmatprep.subr.bf16.mxu0 0
    %842 = vmatpush1.bf16.msra.mxu0 0
    %843 = vmatprep.subr.bf16.mxu0 0
    %844 = vmatpush1.bf16.msra.mxu0 0
    %845 = vmatprep.subr.bf16.mxu0 0
    %846 = vmatpush1.bf16.msra.mxu0 0
    %847 = vmatprep.subr.bf16.mxu0 0
    %848 = vmatpush1.bf16.msra.mxu0 0
    %849 = vmatprep.mubr.bf16.mxu0 0
    %850 = vmatmul.mubr.bf16.gmra.mrb[0].mxu0 %v745
    %v851 = vpop.f32.mrb[0].mxu0
    %v852 = vadd.f32 %v767, %v851
    %v853 = vpop.f32.mrb[0].mxu0
    %v854 = vpop.f32.mrb[0].mxu0
    %v855 = vpop.f32.mrb[0].mxu0
    %856 = vdwg.mxu0
    %v857 = vpack.c.bf16 %v563, %v563
    %v858 = vld [vmem:[#allocation8] sm:$0xf]
    %v859 = vld [vmem:[#allocation8 + $0x4] sm:$0xf]
    %v860 = vld [vmem:[#allocation8 + $0x8] sm:$0xf]
    %v861 = vld [vmem:[#allocation8 + $0xc] sm:$0xf]
    %v862 = vld [vmem:[#allocation8 + $0x10] sm:$0xf]
    %v863 = vld [vmem:[#allocation8 + $0x14] sm:$0xf]
    %v864 = vld [vmem:[#allocation8 + $0x18] sm:$0xf]
    %v865 = vld [vmem:[#allocation8 + $0x1c] sm:$0xf]
    %v866 = vld [vmem:[#allocation8 + $0x20] sm:$0xf]
    %v867 = vld [vmem:[#allocation8 + $0x24] sm:$0xf]
    %v868 = vld [vmem:[#allocation8 + $0x28] sm:$0xf]
    %v869 = vld [vmem:[#allocation8 + $0x2c] sm:$0xf]
    %v870 = vld [vmem:[#allocation8 + $0x30] sm:$0xf]
    %v871 = vld [vmem:[#allocation8 + $0x34] sm:$0xf]
    %v872 = vld [vmem:[#allocation8 + $0x38] sm:$0xf]
    %v873 = vld [vmem:[#allocation8 + $0x3c] sm:$0xf]
    %v874 = vld [vmem:[#allocation10] sm:$0x1]
    %v876 = vlaneseq
    %v877 = vshrl.u32 %v876, 7
    %v878 = vsub.s32 0, %v877
    %v879 = vrot.slane %v874, %v878
    %v897 = vunpack.c.l.b16 %v858
    %v898 = vunpack.c.l.b16 %v859
    %v899 = vunpack.c.l.b16 %v860
    %v900 = vunpack.c.l.b16 %v861
    %v901 = vunpack.c.l.b16 %v862
    %v902 = vunpack.c.l.b16 %v863
    %v903 = vunpack.c.l.b16 %v864
    %v904 = vunpack.c.l.b16 %v865
    %v905 = vunpack.c.l.b16 %v866
    %v906 = vunpack.c.l.b16 %v867
    %v907 = vunpack.c.l.b16 %v868
    %v908 = vunpack.c.l.b16 %v869
    %v909 = vunpack.c.l.b16 %v870
    %v910 = vunpack.c.l.b16 %v871
    %v911 = vunpack.c.l.b16 %v872
    %v912 = vunpack.c.l.b16 %v873
    %v913 = vpack.c.b16 %v898, %v897
    %v914 = vpack.c.b16 %v900, %v899
    %v915 = vpack.c.b16 %v902, %v901
    %v916 = vpack.c.b16 %v904, %v903
    %v917 = vpack.c.b16 %v906, %v905
    %v918 = vpack.c.b16 %v908, %v907
    %v919 = vpack.c.b16 %v910, %v909
    %v920 = vpack.c.b16 %v912, %v911
    %929 = vmatprep.subr.bf16.mxu0 0
    %930 = vmatpush1.bf16.msra.mxu0 %v913
    %931 = vmatprep.subr.bf16.mxu0 0
    %932 = vmatpush1.bf16.msra.mxu0 %v914
    %933 = vmatprep.subr.bf16.mxu0 0
    %934 = vmatpush1.bf16.msra.mxu0 %v915
    %935 = vmatprep.subr.bf16.mxu0 0
    %936 = vmatpush1.bf16.msra.mxu0 %v916
    %937 = vmatprep.subr.bf16.mxu0 0
    %938 = vmatpush1.bf16.msra.mxu0 %v917
    %939 = vmatprep.subr.bf16.mxu0 0
    %940 = vmatpush1.bf16.msra.mxu0 %v918
    %941 = vmatprep.subr.bf16.mxu0 0
    %942 = vmatpush1.bf16.msra.mxu0 %v919
    %943 = vmatprep.subr.bf16.mxu0 0
    %944 = vmatpush1.bf16.msra.mxu0 %v920
    %945 = vmatprep.subr.bf16.mxu0 0
    %946 = vmatpush1.bf16.msra.mxu0 0
    %947 = vmatprep.subr.bf16.mxu0 0
    %948 = vmatpush1.bf16.msra.mxu0 0
    %949 = vmatprep.subr.bf16.mxu0 0
    %950 = vmatpush1.bf16.msra.mxu0 0
    %951 = vmatprep.subr.bf16.mxu0 0
    %952 = vmatpush1.bf16.msra.mxu0 0
    %953 = vmatprep.subr.bf16.mxu0 0
    %954 = vmatpush1.bf16.msra.mxu0 0
    %955 = vmatprep.subr.bf16.mxu0 0
    %956 = vmatpush1.bf16.msra.mxu0 0
    %957 = vmatprep.subr.bf16.mxu0 0
    %958 = vmatpush1.bf16.msra.mxu0 0
    %959 = vmatprep.subr.bf16.mxu0 0
    %960 = vmatpush1.bf16.msra.mxu0 0
    %961 = vmatprep.mubr.bf16.mxu0 0
    %962 = vmatmul.mubr.bf16.gmra.mrb[0].mxu0 %v857
    %v963 = vpop.f32.mrb[0].mxu0
    %v964 = vadd.f32 %v879, %v963
    %v965 = vpop.f32.mrb[0].mxu0
    %v966 = vpop.f32.mrb[0].mxu0
    %v967 = vpop.f32.mrb[0].mxu0
    %968 = vdwg.mxu0
    %v969 = vmul.f32 %v852, %v964
    %v970 = vmax.f32 %v969, 0.0
    %v971 = vld [vmem:[#allocation20] sm:$0xf]
    %v972 = vld [vmem:[#allocation20 + $0x4] sm:$0xf]
    %v973 = vld [vmem:[#allocation20 + $0x8] sm:$0xf]
    %v974 = vld [vmem:[#allocation20 + $0xc] sm:$0xf]
    %v975 = vld [vmem:[#allocation20 + $0x10] sm:$0xf]
    %v976 = vld [vmem:[#allocation20 + $0x14] sm:$0xf]
    %v977 = vld [vmem:[#allocation20 + $0x18] sm:$0xf]
    %v978 = vld [vmem:[#allocation20 + $0x1c] sm:$0xf]
    %v979 = vld [vmem:[#allocation20 + $0x20] sm:$0xf]
    %v980 = vld [vmem:[#allocation20 + $0x24] sm:$0xf]
    %v981 = vld [vmem:[#allocation20 + $0x28] sm:$0xf]
    %v982 = vld [vmem:[#allocation20 + $0x2c] sm:$0xf]
    %v983 = vld [vmem:[#allocation20 + $0x30] sm:$0xf]
    %v984 = vld [vmem:[#allocation20 + $0x34] sm:$0xf]
    %v985 = vld [vmem:[#allocation20 + $0x38] sm:$0xf]
    %v986 = vld [vmem:[#allocation20 + $0x3c] sm:$0xf]
    %v987 = vld [vmem:[#allocation20 + $0x40] sm:$0xf]
    %v988 = vld [vmem:[#allocation20 + $0x44] sm:$0xf]
    %v989 = vld [vmem:[#allocation20 + $0x48] sm:$0xf]
    %v990 = vld [vmem:[#allocation20 + $0x4c] sm:$0xf]
    %v991 = vld [vmem:[#allocation20 + $0x50] sm:$0xf]
    %v992 = vld [vmem:[#allocation20 + $0x54] sm:$0xf]
    %v993 = vld [vmem:[#allocation20 + $0x58] sm:$0xf]
    %v994 = vld [vmem:[#allocation20 + $0x5c] sm:$0xf]
    %v995 = vld [vmem:[#allocation20 + $0x60] sm:$0xf]
    %v996 = vld [vmem:[#allocation20 + $0x64] sm:$0xf]
    %v997 = vld [vmem:[#allocation20 + $0x68] sm:$0xf]
    %v998 = vld [vmem:[#allocation20 + $0x6c] sm:$0xf]
    %v999 = vld [vmem:[#allocation20 + $0x70] sm:$0xf]
    %v1000 = vld [vmem:[#allocation20 + $0x74] sm:$0xf]
    %v1001 = vld [vmem:[#allocation20 + $0x78] sm:$0xf]
    %v1002 = vld [vmem:[#allocation20 + $0x7c] sm:$0xf]
    %v1003 = vld [vmem:[#allocation22] sm:$0x1]
    %v1005 = vlaneseq
    %v1006 = vshrl.u32 %v1005, 7
    %v1007 = vsub.s32 0, %v1006
    %v1008 = vrot.slane %v1003, %v1007
    %v1042 = vunpack.c.l.b16 %v971
    %v1043 = vunpack.c.l.b16 %v972
    %v1044 = vunpack.c.l.b16 %v973
    %v1045 = vunpack.c.l.b16 %v974
    %v1046 = vunpack.c.l.b16 %v975
    %v1047 = vunpack.c.l.b16 %v976
    %v1048 = vunpack.c.l.b16 %v977
    %v1049 = vunpack.c.l.b16 %v978
    %v1050 = vunpack.c.l.b16 %v979
    %v1051 = vunpack.c.l.b16 %v980
    %v1052 = vunpack.c.l.b16 %v981
    %v1053 = vunpack.c.l.b16 %v982
    %v1054 = vunpack.c.l.b16 %v983
    %v1055 = vunpack.c.l.b16 %v984
    %v1056 = vunpack.c.l.b16 %v985
    %v1057 = vunpack.c.l.b16 %v986
    %v1058 = vunpack.c.l.b16 %v987
    %v1059 = vunpack.c.l.b16 %v988
    %v1060 = vunpack.c.l.b16 %v989
    %v1061 = vunpack.c.l.b16 %v990
    %v1062 = vunpack.c.l.b16 %v991
    %v1063 = vunpack.c.l.b16 %v992
    %v1064 = vunpack.c.l.b16 %v993
    %v1065 = vunpack.c.l.b16 %v994
    %v1066 = vunpack.c.l.b16 %v995
    %v1067 = vunpack.c.l.b16 %v996
    %v1068 = vunpack.c.l.b16 %v997
    %v1069 = vunpack.c.l.b16 %v998
    %v1070 = vunpack.c.l.b16 %v999
    %v1071 = vunpack.c.l.b16 %v1000
    %v1072 = vunpack.c.l.b16 %v1001
    %v1073 = vunpack.c.l.b16 %v1002
    %v1074 = vpack.c.b16 %v1043, %v1042
    %v1075 = vpack.c.b16 %v1045, %v1044
    %v1076 = vpack.c.b16 %v1047, %v1046
    %v1077 = vpack.c.b16 %v1049, %v1048
    %v1078 = vpack.c.b16 %v1051, %v1050
    %v1079 = vpack.c.b16 %v1053, %v1052
    %v1080 = vpack.c.b16 %v1055, %v1054
    %v1081 = vpack.c.b16 %v1057, %v1056
    %v1082 = vpack.c.b16 %v1059, %v1058
    %v1083 = vpack.c.b16 %v1061, %v1060
    %v1084 = vpack.c.b16 %v1063, %v1062
    %v1085 = vpack.c.b16 %v1065, %v1064
    %v1086 = vpack.c.b16 %v1067, %v1066
    %v1087 = vpack.c.b16 %v1069, %v1068
    %v1088 = vpack.c.b16 %v1071, %v1070
    %v1089 = vpack.c.b16 %v1073, %v1072
    %1106 = vmatprep.subr.bf16.mxu0 0
    %1107 = vmatpush1.bf16.msra.mxu0 %v1074
    %1108 = vmatprep.subr.bf16.mxu0 0
    %1109 = vmatpush1.bf16.msra.mxu0 %v1075
    %1110 = vmatprep.subr.bf16.mxu0 0
    %1111 = vmatpush1.bf16.msra.mxu0 %v1076
    %1112 = vmatprep.subr.bf16.mxu0 0
    %1113 = vmatpush1.bf16.msra.mxu0 %v1077
    %1114 = vmatprep.subr.bf16.mxu0 0
    %1115 = vmatpush1.bf16.msra.mxu0 %v1078
    %1116 = vmatprep.subr.bf16.mxu0 0
    %1117 = vmatpush1.bf16.msra.mxu0 %v1079
    %1118 = vmatprep.subr.bf16.mxu0 0
    %1119 = vmatpush1.bf16.msra.mxu0 %v1080
    %1120 = vmatprep.subr.bf16.mxu0 0
    %1121 = vmatpush1.bf16.msra.mxu0 %v1081
    %1122 = vmatprep.subr.bf16.mxu0 0
    %1123 = vmatpush1.bf16.msra.mxu0 %v1082
    %1124 = vmatprep.subr.bf16.mxu0 0
    %1125 = vmatpush1.bf16.msra.mxu0 %v1083
    %1126 = vmatprep.subr.bf16.mxu0 0
    %1127 = vmatpush1.bf16.msra.mxu0 %v1084
    %1128 = vmatprep.subr.bf16.mxu0 0
    %1129 = vmatpush1.bf16.msra.mxu0 %v1085
    %1130 = vmatprep.subr.bf16.mxu0 0
    %1131 = vmatpush1.bf16.msra.mxu0 %v1086
    %1132 = vmatprep.subr.bf16.mxu0 0
    %1133 = vmatpush1.bf16.msra.mxu0 %v1087
    %1134 = vmatprep.subr.bf16.mxu0 0
    %1135 = vmatpush1.bf16.msra.mxu0 %v1088
    %1136 = vmatprep.subr.bf16.mxu0 0
    %1137 = vmatpush1.bf16.msra.mxu0 %v1089
    %1138 = vmatprep.mubr.bf16.mxu0 %v276
    %1139 = vmatmul.mubr.bf16.gmra.mrb[0].mxu0 %v275
    %v1140 = vpop.f32.mrb[0].mxu0
    %v1141 = vadd.f32 %v1008, %v1140
    %v1142 = vpop.f32.mrb[0].mxu0
    %v1143 = vpop.f32.mrb[0].mxu0
    %v1144 = vpop.f32.mrb[0].mxu0
    %1145 = vdwg.mxu0
    %v1146 = vsub.f32 0.0, %v1141
    %v1147 = vmul.f32 %v1146, 1.442695
    %v1148 = vpow.pop %v1147
    %v1149 = vadd.f32 %v1148, 1.0
    %v1150 = vrcp.pop %v1149
    %v1151 = vmul.f32 %v1141, %v1150
    %v1152 = vpack.c.bf16 %v1151, %v1151
    %v1153 = vld [vmem:[%s18] sm:$0xf]
    %v1154 = vld [vmem:[%s18 + $0x4] sm:$0xf]
    %v1155 = vld [vmem:[%s18 + $0x8] sm:$0xf]
    %v1156 = vld [vmem:[%s18 + $0xc] sm:$0xf]
    %v1157 = vld [vmem:[%s18 + $0x10] sm:$0xf]
    %v1158 = vld [vmem:[%s18 + $0x14] sm:$0xf]
    %v1159 = vld [vmem:[%s18 + $0x18] sm:$0xf]
    %v1160 = vld [vmem:[%s18 + $0x1c] sm:$0xf]
    %v1161 = vld [vmem:[%s18 + $0x20] sm:$0xf]
    %v1162 = vld [vmem:[%s18 + $0x24] sm:$0xf]
    %v1163 = vld [vmem:[%s18 + $0x28] sm:$0xf]
    %v1164 = vld [vmem:[%s18 + $0x2c] sm:$0xf]
    %v1165 = vld [vmem:[%s18 + $0x30] sm:$0xf]
    %v1166 = vld [vmem:[%s18 + $0x34] sm:$0xf]
    %v1167 = vld [vmem:[%s18 + $0x38] sm:$0xf]
    %v1168 = vld [vmem:[%s18 + $0x3c] sm:$0xf]
    %v1169 = vld [vmem:[%s19] sm:$0x1]
    %v1171 = vlaneseq
    %v1172 = vshrl.u32 %v1171, 7
    %v1173 = vsub.s32 0, %v1172
    %v1174 = vrot.slane %v1169, %v1173
    %v1192 = vunpack.c.l.b16 %v1153
    %v1193 = vunpack.c.l.b16 %v1154
    %v1194 = vunpack.c.l.b16 %v1155
    %v1195 = vunpack.c.l.b16 %v1156
    %v1196 = vunpack.c.l.b16 %v1157
    %v1197 = vunpack.c.l.b16 %v1158
    %v1198 = vunpack.c.l.b16 %v1159
    %v1199 = vunpack.c.l.b16 %v1160
    %v1200 = vunpack.c.l.b16 %v1161
    %v1201 = vunpack.c.l.b16 %v1162
    %v1202 = vunpack.c.l.b16 %v1163
    %v1203 = vunpack.c.l.b16 %v1164
    %v1204 = vunpack.c.l.b16 %v1165
    %v1205 = vunpack.c.l.b16 %v1166
    %v1206 = vunpack.c.l.b16 %v1167
    %v1207 = vunpack.c.l.b16 %v1168
    %v1208 = vpack.c.b16 %v1193, %v1192
    %v1209 = vpack.c.b16 %v1195, %v1194
    %v1210 = vpack.c.b16 %v1197, %v1196
    %v1211 = vpack.c.b16 %v1199, %v1198
    %v1212 = vpack.c.b16 %v1201, %v1200
    %v1213 = vpack.c.b16 %v1203, %v1202
    %v1214 = vpack.c.b16 %v1205, %v1204
    %v1215 = vpack.c.b16 %v1207, %v1206
    %1224 = vmatprep.subr.bf16.mxu0 0
    %1225 = vmatpush1.bf16.msra.mxu0 %v1208
    %1226 = vmatprep.subr.bf16.mxu0 0
    %1227 = vmatpush1.bf16.msra.mxu0 %v1209
    %1228 = vmatprep.subr.bf16.mxu0 0
    %1229 = vmatpush1.bf16.msra.mxu0 %v1210
    %1230 = vmatprep.subr.bf16.mxu0 0
    %1231 = vmatpush1.bf16.msra.mxu0 %v1211
    %1232 = vmatprep.subr.bf16.mxu0 0
    %1233 = vmatpush1.bf16.msra.mxu0 %v1212
    %1234 = vmatprep.subr.bf16.mxu0 0
    %1235 = vmatpush1.bf16.msra.mxu0 %v1213
    %1236 = vmatprep.subr.bf16.mxu0 0
    %1237 = vmatpush1.bf16.msra.mxu0 %v1214
    %1238 = vmatprep.subr.bf16.mxu0 0
    %1239 = vmatpush1.bf16.msra.mxu0 %v1215
    %1240 = vmatprep.subr.bf16.mxu0 0
    %1241 = vmatpush1.bf16.msra.mxu0 0
    %1242 = vmatprep.subr.bf16.mxu0 0
    %1243 = vmatpush1.bf16.msra.mxu0 0
    %1244 = vmatprep.subr.bf16.mxu0 0
    %1245 = vmatpush1.bf16.msra.mxu0 0
    %1246 = vmatprep.subr.bf16.mxu0 0
    %1247 = vmatpush1.bf16.msra.mxu0 0
    %1248 = vmatprep.subr.bf16.mxu0 0
    %1249 = vmatpush1.bf16.msra.mxu0 0
    %1250 = vmatprep.subr.bf16.mxu0 0
    %1251 = vmatpush1.bf16.msra.mxu0 0
    %1252 = vmatprep.subr.bf16.mxu0 0
    %1253 = vmatpush1.bf16.msra.mxu0 0
    %1254 = vmatprep.subr.bf16.mxu0 0
    %1255 = vmatpush1.bf16.msra.mxu0 0
    %1256 = vmatprep.mubr.bf16.mxu0 0
    %1257 = vmatmul.mubr.bf16.gmra.mrb[0].mxu0 %v1152
    %v1258 = vpop.f32.mrb[0].mxu0
    %v1259 = vadd.f32 %v1174, %v1258
    %v1260 = vpop.f32.mrb[0].mxu0
    %v1261 = vpop.f32.mrb[0].mxu0
    %v1262 = vpop.f32.mrb[0].mxu0
    %1263 = vdwg.mxu0
    %v1264 = vpack.c.bf16 %v970, %v970
    %v1265 = vld [vmem:[#allocation17] sm:$0xf]
    %v1266 = vld [vmem:[#allocation17 + $0x4] sm:$0xf]
    %v1267 = vld [vmem:[#allocation17 + $0x8] sm:$0xf]
    %v1268 = vld [vmem:[#allocation17 + $0xc] sm:$0xf]
    %v1269 = vld [vmem:[#allocation17 + $0x10] sm:$0xf]
    %v1270 = vld [vmem:[#allocation17 + $0x14] sm:$0xf]
    %v1271 = vld [vmem:[#allocation17 + $0x18] sm:$0xf]
    %v1272 = vld [vmem:[#allocation17 + $0x1c] sm:$0xf]
    %v1273 = vld [vmem:[#allocation17 + $0x20] sm:$0xf]
    %v1274 = vld [vmem:[#allocation17 + $0x24] sm:$0xf]
    %v1275 = vld [vmem:[#allocation17 + $0x28] sm:$0xf]
    %v1276 = vld [vmem:[#allocation17 + $0x2c] sm:$0xf]
    %v1277 = vld [vmem:[#allocation17 + $0x30] sm:$0xf]
    %v1278 = vld [vmem:[#allocation17 + $0x34] sm:$0xf]
    %v1279 = vld [vmem:[#allocation17 + $0x38] sm:$0xf]
    %v1280 = vld [vmem:[#allocation17 + $0x3c] sm:$0xf]
    %v1281 = vld [vmem:[#allocation19] sm:$0x1]
    %v1283 = vlaneseq
    %v1284 = vshrl.u32 %v1283, 7
    %v1285 = vsub.s32 0, %v1284
    %v1286 = vrot.slane %v1281, %v1285
    %v1304 = vunpack.c.l.b16 %v1265
    %v1305 = vunpack.c.l.b16 %v1266
    %v1306 = vunpack.c.l.b16 %v1267
    %v1307 = vunpack.c.l.b16 %v1268
    %v1308 = vunpack.c.l.b16 %v1269
    %v1309 = vunpack.c.l.b16 %v1270
    %v1310 = vunpack.c.l.b16 %v1271
    %v1311 = vunpack.c.l.b16 %v1272
    %v1312 = vunpack.c.l.b16 %v1273
    %v1313 = vunpack.c.l.b16 %v1274
    %v1314 = vunpack.c.l.b16 %v1275
    %v1315 = vunpack.c.l.b16 %v1276
    %v1316 = vunpack.c.l.b16 %v1277
    %v1317 = vunpack.c.l.b16 %v1278
    %v1318 = vunpack.c.l.b16 %v1279
    %v1319 = vunpack.c.l.b16 %v1280
    %v1320 = vpack.c.b16 %v1305, %v1304
    %v1321 = vpack.c.b16 %v1307, %v1306
    %v1322 = vpack.c.b16 %v1309, %v1308
    %v1323 = vpack.c.b16 %v1311, %v1310
    %v1324 = vpack.c.b16 %v1313, %v1312
    %v1325 = vpack.c.b16 %v1315, %v1314
    %v1326 = vpack.c.b16 %v1317, %v1316
    %v1327 = vpack.c.b16 %v1319, %v1318
    %1336 = vmatprep.subr.bf16.mxu0 0
    %1337 = vmatpush1.bf16.msra.mxu0 %v1320
    %1338 = vmatprep.subr.bf16.mxu0 0
    %1339 = vmatpush1.bf16.msra.mxu0 %v1321
    %1340 = vmatprep.subr.bf16.mxu0 0
    %1341 = vmatpush1.bf16.msra.mxu0 %v1322
    %1342 = vmatprep.subr.bf16.mxu0 0
    %1343 = vmatpush1.bf16.msra.mxu0 %v1323
    %1344 = vmatprep.subr.bf16.mxu0 0
    %1345 = vmatpush1.bf16.msra.mxu0 %v1324
    %1346 = vmatprep.subr.bf16.mxu0 0
    %1347 = vmatpush1.bf16.msra.mxu0 %v1325
    %1348 = vmatprep.subr.bf16.mxu0 0
    %1349 = vmatpush1.bf16.msra.mxu0 %v1326
    %1350 = vmatprep.subr.bf16.mxu0 0
    %1351 = vmatpush1.bf16.msra.mxu0 %v1327
    %1352 = vmatprep.subr.bf16.mxu0 0
    %1353 = vmatpush1.bf16.msra.mxu0 0
    %1354 = vmatprep.subr.bf16.mxu0 0
    %1355 = vmatpush1.bf16.msra.mxu0 0
    %1356 = vmatprep.subr.bf16.mxu0 0
    %1357 = vmatpush1.bf16.msra.mxu0 0
    %1358 = vmatprep.subr.bf16.mxu0 0
    %1359 = vmatpush1.bf16.msra.mxu0 0
    %1360 = vmatprep.subr.bf16.mxu0 0
    %1361 = vmatpush1.bf16.msra.mxu0 0
    %1362 = vmatprep.subr.bf16.mxu0 0
    %1363 = vmatpush1.bf16.msra.mxu0 0
    %1364 = vmatprep.subr.bf16.mxu0 0
    %1365 = vmatpush1.bf16.msra.mxu0 0
    %1366 = vmatprep.subr.bf16.mxu0 0
    %1367 = vmatpush1.bf16.msra.mxu0 0
    %1368 = vmatprep.mubr.bf16.mxu0 0
    %1369 = vmatmul.mubr.bf16.gmra.mrb[0].mxu0 %v1264
    %v1370 = vpop.f32.mrb[0].mxu0
    %v1371 = vadd.f32 %v1286, %v1370
    %v1372 = vpop.f32.mrb[0].mxu0
    %v1373 = vpop.f32.mrb[0].mxu0
    %v1374 = vpop.f32.mrb[0].mxu0
    %1375 = vdwg.mxu0
    %v1376 = vmul.f32 %v1259, %v1371
    %1377 = vst [vmem:[#allocation23] sm:$0xff] %v1376
    // Predicated region
    $region134: #{tpu_custom_call.1} parent=1 // pred_check
      _
    $region135: #{tpu_custom_call.1} parent=1 // pred_check_branch
      %1379 = sbr.rel (0) target = $region137
    $region136: #{tpu_custom_call.1} parent=1 // pred_region
      %s1381 = ssub.s32 128, 128
      %1382 = vsyncadd [#allocation4], %s1381
      %s1384 = sshll.u32 [#allocation23], 4
      %s1385 = int_to_ptr.vmem [resolvable:$true] %s1384
      %1387 = dma.vmem_to_hbm [thread:$0]  %s1385, 128, %s20, [#allocation4]
    $region137: #{tpu_custom_call.1} parent=1 // pred_fallthru
      _
    // Predicated region
    $region138: #{tpu_custom_call.1} parent=1 // pred_check
      _
    $region139: #{tpu_custom_call.1} parent=1 // pred_check_branch
      %1389 = sbr.rel (0) target = $region141
    $region140: #{tpu_custom_call.1} parent=1 // pred_region
      %1390 = dma.done [#allocation4], 128
    $region141: #{tpu_custom_call.1} parent=1 // pred_fallthru
      _
    %1391 = vsyncpa [#allocation3], 1
    %1392 = vsyncpa [#allocation6], 1
    %1393 = vsyncpa [#allocation9], 1
    %1394 = vsyncpa [#allocation12], 1
    %1395 = vsyncpa [#allocation15], 1
    %1396 = vsyncpa [#allocation18], 1
    %1397 = vsyncpa [#allocation21], 1
    %1398 = vsyncpa [#allocation4], 1

</llo_original>
